<compile_context>
chip_gen: v6e
topology: v6e:2x2x1
jax: 0.10.0
libtpu: 0.0.40
codegen_flags: <defaults>
</compile_context>

<pallas_src>
import functools

import jax
import jax.numpy as jnp
import numpy as np
from jax import lax
from jax.experimental import pallas as pl
from jax.experimental.pallas import tpu as pltpu


def _round_up(v, m):
    return (v + m - 1) // m * m


# ----------------------------------------------------------------------------
# Kernel helpers
# ----------------------------------------------------------------------------
def _silu(v, *, approx):
    # SiLU(v) = v * sigmoid(v).  exp / reciprocal land on the EUP slot, keeping
    # the VALU free for the bias adds, DW-conv MACs and the residual add.
    if approx:
        return v * pl.reciprocal(1.0 + jnp.exp(-v), approx=True)
    return v * jax.nn.sigmoid(v)


def _dw_conv5x5(x, wd, cmask, flat_idx, *, W, HW):
    """Depthwise 5x5 conv (stride=1, pad=2) on channel-major flattened images.

    x:        (C, H*W) f32 activations (lane-dense spatial axis).
    wd:       (C, 25)  per-channel taps (BN scale folded), compute dtype.
    cmask:    (5, H*W) column-validity masks (one per kw), compute dtype.
    flat_idx: (1, H*W) int32 flattened spatial index (for H-edge row masks).

    Roll-based formulation (no zero-halo buffer, no unaligned lane slices):
      1. 4 masked horizontal lane rolls (kw offsets -2,-1,+1,+2) + identity.
      2. per-kh weighted sums over the 5 horizontal taps (the 25-MAC floor).
      3. 4 vertical rolls by (kh-2)*W lanes with H-edge masks; cross-row
         accumulation always in f32.
    The rolls themselves stay in f32 (layout-safe); the MACs run in wd.dtype
    (bf16 on the fast path -> packed VPU math on v6e/v7x).
    """
    dw_dtype = wd.dtype

    # --- horizontal taps: shifted copies of the image, W-edge wrap masked ----
    shifts = []
    for kw in range(5):
        s = kw - 2
        if s == 0:
            h = x.astype(dw_dtype)
        else:
            # rolled[i] = x[(i + s) mod HW]; cmask kills row/image wrap columns.
            h = pltpu.roll(x, (-s) % HW, 1).astype(dw_dtype)
            h = h * cmask[kw:kw + 1, :]
        shifts.append(h)

    # --- per-row weighted sums, then row shifts + H-edge masks ---------------
    out = None
    for kh in range(5):
        r = kh - 2
        rs = shifts[0] * wd[:, kh * 5:kh * 5 + 1]
        for kw in range(1, 5):
            t = kh * 5 + kw
            rs = rs + shifts[kw] * wd[:, t:t + 1]
        rs = rs.astype(jnp.float32)                # cross-row accumulation in f32
        if r != 0:
            # rolled[i] = rs[(i + r*W) mod HW]; mask rows whose source row is
            # outside the image (contiguous row block at one end).
            rs = pltpu.roll(rs, (-r * W) % HW, 1)
            if r > 0:
                rs = jnp.where(flat_idx < HW - r * W, rs, 0.0)
            else:
                rs = jnp.where(flat_idx >= (-r) * W, rs, 0.0)
        out = rs if out is None else out + rs
    return out


# ----------------------------------------------------------------------------
# Pallas kernel (one image per grid step)
# ----------------------------------------------------------------------------
def _ghost_bottleneck_kernel(
        x_ref,                       # (1, Cp, HW)   Cp = 2*c_p (per-half padded)
        w1_ref, b1_ref,              # GhostConv1.cv1: 1x1 (BN folded) + bias, SiLU
        wd1_ref, bd1_ref,            # GhostConv1.cv2: 5x5 DW (BN folded) + bias, SiLU
        w2a_ref, w2b_ref, b2_ref,    # GhostConv2.cv1: split 1x1 (BN folded) + bias
        wd2_ref, bd2_ref,            # GhostConv2.cv2: 5x5 DW (BN folded) + bias
        cmask_ref,                   # (5, HW) column-validity masks
        o_ref,                       # (1, Cp, HW)
        *, W, HW, c_half, mxu_dtype, dw_dtype, approx):
    # Cheap in-kernel constants / parameter casts (once per grid step).
    flat_idx = lax.broadcasted_iota(jnp.int32, (1, HW), 1)
    cmask = cmask_ref[...].astype(dw_dtype)

    w1 = w1_ref[...].astype(mxu_dtype)
    w2a = w2a_ref[...].astype(mxu_dtype)
    w2b = w2b_ref[...].astype(mxu_dtype)
    wd1 = wd1_ref[...].astype(dw_dtype)
    wd2 = wd2_ref[...].astype(dw_dtype)
    b1, bd1 = b1_ref[...], bd1_ref[...]
    b2, bd2 = b2_ref[...], bd2_ref[...]

    x2 = x_ref[0].astype(jnp.float32)              # (Cp, HW)

    # ---- GhostConv(c1, c_) with SiLU (BN scales already folded) ------------
    a = jnp.dot(w1, x2.astype(mxu_dtype),
                preferred_element_type=jnp.float32)          # (ch1p, HW)
    a = _silu(a + b1, approx=approx)
    g = _dw_conv5x5(a, wd1, cmask, flat_idx, W=W, HW=HW)      # cheap-op branch
    g = _silu(g + bd1, approx=approx)

    # ---- GhostConv(c_, c2), linear: concat-free split matmul ---------------
    p = (jnp.dot(w2a, a.astype(mxu_dtype), preferred_element_type=jnp.float32)
         + jnp.dot(w2b, g.astype(mxu_dtype), preferred_element_type=jnp.float32)
         + b2)                                                # (c_p, HW)
    q = _dw_conv5x5(p, wd2, cmask, flat_idx, W=W, HW=HW) + bd2

    # ---- identity shortcut (s == 1): two sublane-aligned half-stores -------
    o_ref[0, :c_half, :] = (p + x2[:c_half]).astype(o_ref.dtype)
    o_ref[0, c_half:, :] = (q + x2[c_half:]).astype(o_ref.dtype)


# ----------------------------------------------------------------------------
# Wrapper
# ----------------------------------------------------------------------------
@functools.partial(jax.jit, static_argnames=("fast",))
def ghost_bottleneck_forward(x_nchw, params, *, fast=False):
    """GhostBottleneck (k=3, s=1) forward.  x_nchw: (N, C, H, W) float32.

    fast=True: bf16 MXU operands + bf16 depthwise MACs (f32 cross-row accum)
    + EUP approx reciprocal in SiLU -- the v6e/v7x path.  fast=False keeps all
    math f32 (v5e has no bf16 VPU).
    """
    N, C1, H, W = x_nchw.shape
    HW = H * W
    ch1 = params["w_g1c1"].shape[0]               # c_ // 2  (first GhostConv half)
    c_ = params["w_g2c1"].shape[0]                # c2 // 2  (second GhostConv half)
    C2 = 2 * c_
    assert C1 == C2, "s=1 GhostBottleneck identity shortcut requires c1 == c2"

    # Sublane padding: channel dims rounded up to multiples of 8 (f32 vregs).
    # Padded weights / taps / biases are zero, so padded channels stay exactly
    # zero end-to-end (incl. the residual) and are sliced away afterwards.
    ch1p = _round_up(ch1, 8)
    c_p = _round_up(c_, 8)
    Cp = 2 * c_p
    f32 = jnp.float32

    # ---- fold BN scales into weights, pad to sublane multiples --------------
    w1 = params["w_g1c1"].reshape(ch1, C1).astype(f32) * params["s_g1c1"][:, None]
    w1p = jnp.zeros((ch1p, Cp), f32)
    w1p = w1p.at[:ch1, :c_].set(w1[:, :c_])                    # x channels 0..c_-1
    w1p = w1p.at[:ch1, c_p:c_p + c_].set(w1[:, c_:])           # x channels c_..2c_-1
    b1p = jnp.zeros((ch1p, 1), f32).at[:ch1, 0].set(params["b_g1c1"])

    wd1 = params["w_g1c2"].reshape(ch1, 25).astype(f32) * params["s_g1c2"][:, None]
    wd1p = jnp.zeros((ch1p, 25), f32).at[:ch1].set(wd1)
    bd1p = jnp.zeros((ch1p, 1), f32).at[:ch1, 0].set(params["b_g1c2"])

    w2 = params["w_g2c1"].reshape(c_, 2 * ch1).astype(f32) * params["s_g2c1"][:, None]
    w2ap = jnp.zeros((c_p, ch1p), f32).at[:c_, :ch1].set(w2[:, :ch1])   # acts on a
    w2bp = jnp.zeros((c_p, ch1p), f32).at[:c_, :ch1].set(w2[:, ch1:])   # acts on g
    b2p = jnp.zeros((c_p, 1), f32).at[:c_, 0].set(params["b_g2c1"])

    wd2 = params["w_g2c2"].reshape(c_, 25).astype(f32) * params["s_g2c2"][:, None]
    wd2p = jnp.zeros((c_p, 25), f32).at[:c_].set(wd2)
    bd2p = jnp.zeros((c_p, 1), f32).at[:c_, 0].set(params["b_g2c2"])

    # ---- input: NCHW -> (N, C, H*W) free reshape + per-half channel pad -----
    x3 = x_nchw.reshape(N, C1, HW)
    if c_p != c_:
        zpad = jnp.zeros((N, c_p - c_, HW), x3.dtype)
        x3 = jnp.concatenate([x3[:, :c_], zpad, x3[:, c_:], zpad], axis=1)

    # ---- column-validity masks for the 5 horizontal taps (trace-time const) -
    col = np.arange(W)
    cmask_np = np.stack(
        [np.tile(((col + kw - 2 >= 0) & (col + kw - 2 < W)).astype(np.float32), H)
         for kw in range(5)], axis=0)
    cmask = jnp.asarray(cmask_np)                 # (5, HW)

    mxu_dtype = jnp.bfloat16 if fast else jnp.float32
    dw_dtype = jnp.bfloat16 if fast else jnp.float32
    kernel = functools.partial(
        _ghost_bottleneck_kernel, W=W, HW=HW, c_half=c_p,
        mxu_dtype=mxu_dtype, dw_dtype=dw_dtype, approx=fast)

    full2d = lambda shape: pl.BlockSpec(shape, lambda n: (0, 0))

    out_pad = pl.pallas_call(
        kernel,
        out_shape=jax.ShapeDtypeStruct((N, Cp, HW), x_nchw.dtype),
        grid=(N,),                                 # one image per step; N>=2 keeps
        in_specs=[                                 # both v7x TCs busy ("parallel").
            pl.BlockSpec((1, Cp, HW), lambda n: (n, 0, 0)),
            full2d((ch1p, Cp)), full2d((ch1p, 1)),
            full2d((ch1p, 25)), full2d((ch1p, 1)),
            full2d((c_p, ch1p)), full2d((c_p, ch1p)), full2d((c_p, 1)),
            full2d((c_p, 25)), full2d((c_p, 1)),
            full2d((5, HW)),
        ],
        out_specs=pl.BlockSpec((1, Cp, HW), lambda n: (n, 0, 0)),
        compiler_params=pltpu.CompilerParams(
            dimension_semantics=("parallel",),
            # Modest explicit budget: safe on v7x's 64 MiB physical VMEM; the
            # per-step blocks here are tiny, so no need to raise it on v5e/v6e.
            vmem_limit_bytes=32 * 1024 * 1024),
    )(x3, w1p, b1p, wd1p, bd1p, w2ap, w2bp, b2p, wd2p, bd2p, cmask)

    # ---- drop channel padding, restore NCHW ---------------------------------
    if c_p != c_:
        out3 = jnp.concatenate([out_pad[:, :c_], out_pad[:, c_p:c_p + c_]], axis=1)
    else:
        out3 = out_pad
    return out3.reshape(N, C2, H, W)


# ----------------------------------------------------------------------------
# Pure-JAX reference (lax.conv) and parameter construction
# ----------------------------------------------------------------------------
def _fold_bn(gamma, beta, mean, var, eps=1e-5):
    scale = gamma / jnp.sqrt(var + eps)
    return scale, beta - mean * scale


def _conv_bn_ref(x, w, scale, bias, *, act, groups=1, pad=0):
    y = lax.conv_general_dilated(
        x, w, window_strides=(1, 1), padding=((pad, pad), (pad, pad)),
        dimension_numbers=("NCHW", "OIHW", "NCHW"),
        feature_group_count=groups)
    y = y * scale.reshape(1, -1, 1, 1) + bias.reshape(1, -1, 1, 1)
    return y * jax.nn.sigmoid(y) if act else y


def _reference_forward(x, p):
    # GhostConv(c1, c_) with SiLU
    a = _conv_bn_ref(x, p["w_g1c1"], p["s_g1c1"], p["b_g1c1"], act=True)
    g = _conv_bn_ref(a, p["w_g1c2"], p["s_g1c2"], p["b_g1c2"], act=True,
                     groups=a.shape[1], pad=2)
    y = jnp.concatenate([a, g], axis=1)
    # GhostConv(c_, c2), linear
    q1 = _conv_bn_ref(y, p["w_g2c1"], p["s_g2c1"], p["b_g2c1"], act=False)
    q2 = _conv_bn_ref(q1, p["w_g2c2"], p["s_g2c2"], p["b_g2c2"], act=False,
                      groups=q1.shape[1], pad=2)
    z = jnp.concatenate([q1, q2], axis=1)
    return z + x                                  # s == 1: identity shortcut


def _init_params(key, c1, c2):
    assert c2 % 4 == 0 and c1 == c2
    c_ = c2 // 2
    ch1 = c_ // 2
    ks = jax.random.split(key, 8)

    def bn(k, c):
        k1, k2, k3, k4 = jax.random.split(k, 4)
        gamma = 1.0 + 0.1 * jax.random.normal(k1, (c,), jnp.float32)
        beta = 0.1 * jax.random.normal(k2, (c,), jnp.float32)
        mean = 0.1 * jax.random.normal(k3, (c,), jnp.float32)
        var = jnp.abs(jax.random.normal(k4, (c,), jnp.float32)) + 0.5
        return _fold_bn(gamma, beta, mean, var)

    p = {}
    p["w_g1c1"] = 0.4 * jax.random.normal(ks[0], (ch1, c1, 1, 1), jnp.float32)
    p["s_g1c1"], p["b_g1c1"] = bn(ks[1], ch1)
    p["w_g1c2"] = 0.2 * jax.random.normal(ks[2], (ch1, 1, 5, 5), jnp.float32)
    p["s_g1c2"], p["b_g1c2"] = bn(ks[3], ch1)
    p["w_g2c1"] = 0.4 * jax.random.normal(ks[4], (c_, c_, 1, 1), jnp.float32)
    p["s_g2c1"], p["b_g2c1"] = bn(ks[5], c_)
    p["w_g2c2"] = 0.2 * jax.random.normal(ks[6], (c_, 1, 5, 5), jnp.float32)
    p["s_g2c2"], p["b_g2c2"] = bn(ks[7], c_)
    return p


if __name__ == "__main__":
    # GhostBottleneck(c1=4, c2=4, k=3, s=1)
    N, C, H, W = 2, 4, 16, 16
    key = jax.random.PRNGKey(0)
    kx, kp = jax.random.split(key)
    x = jax.random.normal(kx, (N, C, H, W), jnp.float32)
    params = _init_params(kp, C, C)

    ref = np.asarray(_reference_forward(x, params))

    # Exact path: f32 everywhere, exact sigmoid.
    out = jax.block_until_ready(ghost_bottleneck_forward(x, params, fast=False))
    np.testing.assert_allclose(np.asarray(out), ref, rtol=2e-3, atol=2e-3)

    # Fast path: bf16 MXU + bf16 depthwise MACs + EUP approx reciprocal.
    out_fast = jax.block_until_ready(ghost_bottleneck_forward(x, params, fast=True))
    np.testing.assert_allclose(np.asarray(out_fast), ref, rtol=1e-1, atol=1e-1)

    print("KERNEL_OK")
</pallas_src>

<mosaic_0001>
module attributes {stable_mosaic.version = 11 : i64} {
  func.func @_ghost_bottleneck_kernel(%arg0: i32, %arg1: memref<1x16x256xf32, #tpu.memory_space<vmem>>, %arg2: memref<8x16xf32, #tpu.memory_space<vmem>>, %arg3: memref<8x1xf32, #tpu.memory_space<vmem>>, %arg4: memref<8x25xf32, #tpu.memory_space<vmem>>, %arg5: memref<8x1xf32, #tpu.memory_space<vmem>>, %arg6: memref<8x8xf32, #tpu.memory_space<vmem>>, %arg7: memref<8x8xf32, #tpu.memory_space<vmem>>, %arg8: memref<8x1xf32, #tpu.memory_space<vmem>>, %arg9: memref<8x25xf32, #tpu.memory_space<vmem>>, %arg10: memref<8x1xf32, #tpu.memory_space<vmem>>, %arg11: memref<5x256xf32, #tpu.memory_space<vmem>>, %arg12: memref<1x16x256xf32, #tpu.memory_space<vmem>>) attributes {dimension_semantics = [#tpu.dimension_semantics<parallel>], iteration_bounds = array<i64: 2>, scalar_prefetch = 0 : i64, scratch_operands = 0 : i64, tpu.core_type = #tpu.core_type<tc>, window_params = [{transform_indices = @transform_0, window_bounds = array<i64: 1, 16, 256>}, {pipeline_mode = #tpu.pipeline_mode<synchronous>, transform_indices = @transform_1, window_bounds = array<i64: 8, 16>}, {pipeline_mode = #tpu.pipeline_mode<synchronous>, transform_indices = @transform_2, window_bounds = array<i64: 8, 1>}, {pipeline_mode = #tpu.pipeline_mode<synchronous>, transform_indices = @transform_3, window_bounds = array<i64: 8, 25>}, {pipeline_mode = #tpu.pipeline_mode<synchronous>, transform_indices = @transform_4, window_bounds = array<i64: 8, 1>}, {pipeline_mode = #tpu.pipeline_mode<synchronous>, transform_indices = @transform_5, window_bounds = array<i64: 8, 8>}, {pipeline_mode = #tpu.pipeline_mode<synchronous>, transform_indices = @transform_6, window_bounds = array<i64: 8, 8>}, {pipeline_mode = #tpu.pipeline_mode<synchronous>, transform_indices = @transform_7, window_bounds = array<i64: 8, 1>}, {pipeline_mode = #tpu.pipeline_mode<synchronous>, transform_indices = @transform_8, window_bounds = array<i64: 8, 25>}, {pipeline_mode = #tpu.pipeline_mode<synchronous>, transform_indices = @transform_9, window_bounds = array<i64: 8, 1>}, {pipeline_mode = #tpu.pipeline_mode<synchronous>, transform_indices = @transform_10, window_bounds = array<i64: 5, 256>}, {transform_indices = @transform_11, window_bounds = array<i64: 1, 16, 256>}]} {
    %0 = tpu.iota {dimensions = array<i32: 1>} : vector<1x256xi32>
    %c0 = arith.constant 0 : index
    %c0_0 = arith.constant 0 : index
    %1 = vector.load %arg11[%c0, %c0_0] : memref<5x256xf32, #tpu.memory_space<vmem>>, vector<5x256xf32>
    %c0_1 = arith.constant 0 : index
    %c0_2 = arith.constant 0 : index
    %2 = vector.load %arg2[%c0_1, %c0_2] : memref<8x16xf32, #tpu.memory_space<vmem>>, vector<8x16xf32>
    %c0_3 = arith.constant 0 : index
    %c0_4 = arith.constant 0 : index
    %3 = vector.load %arg6[%c0_3, %c0_4] : memref<8x8xf32, #tpu.memory_space<vmem>>, vector<8x8xf32>
    %c0_5 = arith.constant 0 : index
    %c0_6 = arith.constant 0 : index
    %4 = vector.load %arg7[%c0_5, %c0_6] : memref<8x8xf32, #tpu.memory_space<vmem>>, vector<8x8xf32>
    %c0_7 = arith.constant 0 : index
    %c0_8 = arith.constant 0 : index
    %5 = vector.load %arg4[%c0_7, %c0_8] : memref<8x25xf32, #tpu.memory_space<vmem>>, vector<8x25xf32>
    %c0_9 = arith.constant 0 : index
    %c0_10 = arith.constant 0 : index
    %6 = vector.load %arg9[%c0_9, %c0_10] : memref<8x25xf32, #tpu.memory_space<vmem>>, vector<8x25xf32>
    %c0_11 = arith.constant 0 : index
    %c0_12 = arith.constant 0 : index
    %7 = vector.load %arg3[%c0_11, %c0_12] : memref<8x1xf32, #tpu.memory_space<vmem>>, vector<8x1xf32>
    %c0_13 = arith.constant 0 : index
    %c0_14 = arith.constant 0 : index
    %8 = vector.load %arg5[%c0_13, %c0_14] : memref<8x1xf32, #tpu.memory_space<vmem>>, vector<8x1xf32>
    %c0_15 = arith.constant 0 : index
    %c0_16 = arith.constant 0 : index
    %9 = vector.load %arg8[%c0_15, %c0_16] : memref<8x1xf32, #tpu.memory_space<vmem>>, vector<8x1xf32>
    %c0_17 = arith.constant 0 : index
    %c0_18 = arith.constant 0 : index
    %10 = vector.load %arg10[%c0_17, %c0_18] : memref<8x1xf32, #tpu.memory_space<vmem>>, vector<8x1xf32>
    %c0_19 = arith.constant 0 : index
    %c0_20 = arith.constant 0 : index
    %c0_21 = arith.constant 0 : index
    %11 = vector.load %arg1[%c0_19, %c0_20, %c0_21] : memref<1x16x256xf32, #tpu.memory_space<vmem>>, vector<1x16x256xf32>
    %12 = vector.shape_cast %11 : vector<1x16x256xf32> to vector<16x256xf32>
    %cst = arith.constant dense<0.000000e+00> : vector<8x256xf32>
    %13 = tpu.matmul %2, %12, %cst {dimension_numbers = #tpu.dot_dimension_numbers<[1], [0], [0], [1], [0, 0, 1, 1], [], []>} : vector<8x16xf32>, vector<16x256xf32>, vector<8x256xf32> -> vector<8x256xf32>
    %14 = vector.broadcast %7 : vector<8x1xf32> to vector<8x256xf32>
    %15 = arith.addf %13, %14 : vector<8x256xf32>
    %16 = arith.negf %15 : vector<8x256xf32>
    %17 = math.exp %16 : vector<8x256xf32>
    %cst_22 = arith.constant 1.000000e+00 : f32
    %18 = vector.broadcast %cst_22 : f32 to vector<8x256xf32>
    %19 = arith.addf %18, %17 : vector<8x256xf32>
    %20 = arith.divf %18, %19 : vector<8x256xf32>
    %21 = arith.mulf %15, %20 : vector<8x256xf32>
    %c2_i32 = arith.constant 2 : i32
    %22 = tpu.dynamic_rotate %21 by %c2_i32 dim 1 : vector<8x256xf32>, i32 -> vector<8x256xf32>
    %23 = vector.extract_strided_slice %1 {offsets = [0, 0], sizes = [1, 256], strides = [1, 1]} : vector<5x256xf32> to vector<1x256xf32>
    %24 = vector.broadcast %23 : vector<1x256xf32> to vector<8x256xf32>
    %25 = arith.mulf %22, %24 : vector<8x256xf32>
    %c1_i32 = arith.constant 1 : i32
    %26 = tpu.dynamic_rotate %21 by %c1_i32 dim 1 : vector<8x256xf32>, i32 -> vector<8x256xf32>
    %27 = vector.extract_strided_slice %1 {offsets = [1, 0], sizes = [1, 256], strides = [1, 1]} : vector<5x256xf32> to vector<1x256xf32>
    %28 = vector.broadcast %27 : vector<1x256xf32> to vector<8x256xf32>
    %29 = arith.mulf %26, %28 : vector<8x256xf32>
    %c255_i32 = arith.constant 255 : i32
    %30 = tpu.dynamic_rotate %21 by %c255_i32 dim 1 : vector<8x256xf32>, i32 -> vector<8x256xf32>
    %31 = vector.extract_strided_slice %1 {offsets = [3, 0], sizes = [1, 256], strides = [1, 1]} : vector<5x256xf32> to vector<1x256xf32>
    %32 = vector.broadcast %31 : vector<1x256xf32> to vector<8x256xf32>
    %33 = arith.mulf %30, %32 : vector<8x256xf32>
    %c254_i32 = arith.constant 254 : i32
    %34 = tpu.dynamic_rotate %21 by %c254_i32 dim 1 : vector<8x256xf32>, i32 -> vector<8x256xf32>
    %35 = vector.extract_strided_slice %1 {offsets = [4, 0], sizes = [1, 256], strides = [1, 1]} : vector<5x256xf32> to vector<1x256xf32>
    %36 = vector.broadcast %35 : vector<1x256xf32> to vector<8x256xf32>
    %37 = arith.mulf %34, %36 : vector<8x256xf32>
    %38 = vector.extract_strided_slice %5 {offsets = [0, 0], sizes = [8, 1], strides = [1, 1]} : vector<8x25xf32> to vector<8x1xf32>
    %39 = vector.broadcast %38 : vector<8x1xf32> to vector<8x256xf32>
    %40 = arith.mulf %25, %39 : vector<8x256xf32>
    %41 = vector.extract_strided_slice %5 {offsets = [0, 1], sizes = [8, 1], strides = [1, 1]} : vector<8x25xf32> to vector<8x1xf32>
    %42 = vector.broadcast %41 : vector<8x1xf32> to vector<8x256xf32>
    %43 = arith.mulf %29, %42 : vector<8x256xf32>
    %44 = arith.addf %40, %43 : vector<8x256xf32>
    %45 = vector.extract_strided_slice %5 {offsets = [0, 2], sizes = [8, 1], strides = [1, 1]} : vector<8x25xf32> to vector<8x1xf32>
    %46 = vector.broadcast %45 : vector<8x1xf32> to vector<8x256xf32>
    %47 = arith.mulf %21, %46 : vector<8x256xf32>
    %48 = arith.addf %44, %47 : vector<8x256xf32>
    %49 = vector.extract_strided_slice %5 {offsets = [0, 3], sizes = [8, 1], strides = [1, 1]} : vector<8x25xf32> to vector<8x1xf32>
    %50 = vector.broadcast %49 : vector<8x1xf32> to vector<8x256xf32>
    %51 = arith.mulf %33, %50 : vector<8x256xf32>
    %52 = arith.addf %48, %51 : vector<8x256xf32>
    %53 = vector.extract_strided_slice %5 {offsets = [0, 4], sizes = [8, 1], strides = [1, 1]} : vector<8x25xf32> to vector<8x1xf32>
    %54 = vector.broadcast %53 : vector<8x1xf32> to vector<8x256xf32>
    %55 = arith.mulf %37, %54 : vector<8x256xf32>
    %56 = arith.addf %52, %55 : vector<8x256xf32>
    %c32_i32 = arith.constant 32 : i32
    %57 = tpu.dynamic_rotate %56 by %c32_i32 dim 1 : vector<8x256xf32>, i32 -> vector<8x256xf32>
    %c32_i32_23 = arith.constant 32 : i32
    %58 = vector.broadcast %c32_i32_23 : i32 to vector<1x256xi32>
    %59 = arith.cmpi sge, %0, %58 : vector<1x256xi32>
    %cst_24 = arith.constant 0.000000e+00 : f32
    %60 = vector.shape_cast %59 : vector<1x256xi1> to vector<1x256xi1>
    %61 = vector.broadcast %60 : vector<1x256xi1> to vector<8x256xi1>
    %62 = vector.broadcast %cst_24 : f32 to vector<8x256xf32>
    %63 = arith.select %61, %57, %62 : vector<8x256xi1>, vector<8x256xf32>
    %64 = vector.extract_strided_slice %5 {offsets = [0, 5], sizes = [8, 1], strides = [1, 1]} : vector<8x25xf32> to vector<8x1xf32>
    %65 = vector.broadcast %64 : vector<8x1xf32> to vector<8x256xf32>
    %66 = arith.mulf %25, %65 : vector<8x256xf32>
    %67 = vector.extract_strided_slice %5 {offsets = [0, 6], sizes = [8, 1], strides = [1, 1]} : vector<8x25xf32> to vector<8x1xf32>
    %68 = vector.broadcast %67 : vector<8x1xf32> to vector<8x256xf32>
    %69 = arith.mulf %29, %68 : vector<8x256xf32>
    %70 = arith.addf %66, %69 : vector<8x256xf32>
    %71 = vector.extract_strided_slice %5 {offsets = [0, 7], sizes = [8, 1], strides = [1, 1]} : vector<8x25xf32> to vector<8x1xf32>
    %72 = vector.broadcast %71 : vector<8x1xf32> to vector<8x256xf32>
    %73 = arith.mulf %21, %72 : vector<8x256xf32>
    %74 = arith.addf %70, %73 : vector<8x256xf32>
    %75 = vector.extract_strided_slice %5 {offsets = [0, 8], sizes = [8, 1], strides = [1, 1]} : vector<8x25xf32> to vector<8x1xf32>
    %76 = vector.broadcast %75 : vector<8x1xf32> to vector<8x256xf32>
    %77 = arith.mulf %33, %76 : vector<8x256xf32>
    %78 = arith.addf %74, %77 : vector<8x256xf32>
    %79 = vector.extract_strided_slice %5 {offsets = [0, 9], sizes = [8, 1], strides = [1, 1]} : vector<8x25xf32> to vector<8x1xf32>
    %80 = vector.broadcast %79 : vector<8x1xf32> to vector<8x256xf32>
    %81 = arith.mulf %37, %80 : vector<8x256xf32>
    %82 = arith.addf %78, %81 : vector<8x256xf32>
    %c16_i32 = arith.constant 16 : i32
    %83 = tpu.dynamic_rotate %82 by %c16_i32 dim 1 : vector<8x256xf32>, i32 -> vector<8x256xf32>
    %c16_i32_25 = arith.constant 16 : i32
    %84 = vector.broadcast %c16_i32_25 : i32 to vector<1x256xi32>
    %85 = arith.cmpi sge, %0, %84 : vector<1x256xi32>
    %cst_26 = arith.constant 0.000000e+00 : f32
    %86 = vector.shape_cast %85 : vector<1x256xi1> to vector<1x256xi1>
    %87 = vector.broadcast %86 : vector<1x256xi1> to vector<8x256xi1>
    %88 = vector.broadcast %cst_26 : f32 to vector<8x256xf32>
    %89 = arith.select %87, %83, %88 : vector<8x256xi1>, vector<8x256xf32>
    %90 = arith.addf %63, %89 : vector<8x256xf32>
    %91 = vector.extract_strided_slice %5 {offsets = [0, 10], sizes = [8, 1], strides = [1, 1]} : vector<8x25xf32> to vector<8x1xf32>
    %92 = vector.broadcast %91 : vector<8x1xf32> to vector<8x256xf32>
    %93 = arith.mulf %25, %92 : vector<8x256xf32>
    %94 = vector.extract_strided_slice %5 {offsets = [0, 11], sizes = [8, 1], strides = [1, 1]} : vector<8x25xf32> to vector<8x1xf32>
    %95 = vector.broadcast %94 : vector<8x1xf32> to vector<8x256xf32>
    %96 = arith.mulf %29, %95 : vector<8x256xf32>
    %97 = arith.addf %93, %96 : vector<8x256xf32>
    %98 = vector.extract_strided_slice %5 {offsets = [0, 12], sizes = [8, 1], strides = [1, 1]} : vector<8x25xf32> to vector<8x1xf32>
    %99 = vector.broadcast %98 : vector<8x1xf32> to vector<8x256xf32>
    %100 = arith.mulf %21, %99 : vector<8x256xf32>
    %101 = arith.addf %97, %100 : vector<8x256xf32>
    %102 = vector.extract_strided_slice %5 {offsets = [0, 13], sizes = [8, 1], strides = [1, 1]} : vector<8x25xf32> to vector<8x1xf32>
    %103 = vector.broadcast %102 : vector<8x1xf32> to vector<8x256xf32>
    %104 = arith.mulf %33, %103 : vector<8x256xf32>
    %105 = arith.addf %101, %104 : vector<8x256xf32>
    %106 = vector.extract_strided_slice %5 {offsets = [0, 14], sizes = [8, 1], strides = [1, 1]} : vector<8x25xf32> to vector<8x1xf32>
    %107 = vector.broadcast %106 : vector<8x1xf32> to vector<8x256xf32>
    %108 = arith.mulf %37, %107 : vector<8x256xf32>
    %109 = arith.addf %105, %108 : vector<8x256xf32>
    %110 = arith.addf %90, %109 : vector<8x256xf32>
    %111 = vector.extract_strided_slice %5 {offsets = [0, 15], sizes = [8, 1], strides = [1, 1]} : vector<8x25xf32> to vector<8x1xf32>
    %112 = vector.broadcast %111 : vector<8x1xf32> to vector<8x256xf32>
    %113 = arith.mulf %25, %112 : vector<8x256xf32>
    %114 = vector.extract_strided_slice %5 {offsets = [0, 16], sizes = [8, 1], strides = [1, 1]} : vector<8x25xf32> to vector<8x1xf32>
    %115 = vector.broadcast %114 : vector<8x1xf32> to vector<8x256xf32>
    %116 = arith.mulf %29, %115 : vector<8x256xf32>
    %117 = arith.addf %113, %116 : vector<8x256xf32>
    %118 = vector.extract_strided_slice %5 {offsets = [0, 17], sizes = [8, 1], strides = [1, 1]} : vector<8x25xf32> to vector<8x1xf32>
    %119 = vector.broadcast %118 : vector<8x1xf32> to vector<8x256xf32>
    %120 = arith.mulf %21, %119 : vector<8x256xf32>
    %121 = arith.addf %117, %120 : vector<8x256xf32>
    %122 = vector.extract_strided_slice %5 {offsets = [0, 18], sizes = [8, 1], strides = [1, 1]} : vector<8x25xf32> to vector<8x1xf32>
    %123 = vector.broadcast %122 : vector<8x1xf32> to vector<8x256xf32>
    %124 = arith.mulf %33, %123 : vector<8x256xf32>
    %125 = arith.addf %121, %124 : vector<8x256xf32>
    %126 = vector.extract_strided_slice %5 {offsets = [0, 19], sizes = [8, 1], strides = [1, 1]} : vector<8x25xf32> to vector<8x1xf32>
    %127 = vector.broadcast %126 : vector<8x1xf32> to vector<8x256xf32>
    %128 = arith.mulf %37, %127 : vector<8x256xf32>
    %129 = arith.addf %125, %128 : vector<8x256xf32>
    %c240_i32 = arith.constant 240 : i32
    %130 = tpu.dynamic_rotate %129 by %c240_i32 dim 1 : vector<8x256xf32>, i32 -> vector<8x256xf32>
    %c240_i32_27 = arith.constant 240 : i32
    %131 = vector.broadcast %c240_i32_27 : i32 to vector<1x256xi32>
    %132 = arith.cmpi slt, %0, %131 : vector<1x256xi32>
    %cst_28 = arith.constant 0.000000e+00 : f32
    %133 = vector.shape_cast %132 : vector<1x256xi1> to vector<1x256xi1>
    %134 = vector.broadcast %133 : vector<1x256xi1> to vector<8x256xi1>
    %135 = vector.broadcast %cst_28 : f32 to vector<8x256xf32>
    %136 = arith.select %134, %130, %135 : vector<8x256xi1>, vector<8x256xf32>
    %137 = arith.addf %110, %136 : vector<8x256xf32>
    %138 = vector.extract_strided_slice %5 {offsets = [0, 20], sizes = [8, 1], strides = [1, 1]} : vector<8x25xf32> to vector<8x1xf32>
    %139 = vector.broadcast %138 : vector<8x1xf32> to vector<8x256xf32>
    %140 = arith.mulf %25, %139 : vector<8x256xf32>
    %141 = vector.extract_strided_slice %5 {offsets = [0, 21], sizes = [8, 1], strides = [1, 1]} : vector<8x25xf32> to vector<8x1xf32>
    %142 = vector.broadcast %141 : vector<8x1xf32> to vector<8x256xf32>
    %143 = arith.mulf %29, %142 : vector<8x256xf32>
    %144 = arith.addf %140, %143 : vector<8x256xf32>
    %145 = vector.extract_strided_slice %5 {offsets = [0, 22], sizes = [8, 1], strides = [1, 1]} : vector<8x25xf32> to vector<8x1xf32>
    %146 = vector.broadcast %145 : vector<8x1xf32> to vector<8x256xf32>
    %147 = arith.mulf %21, %146 : vector<8x256xf32>
    %148 = arith.addf %144, %147 : vector<8x256xf32>
    %149 = vector.extract_strided_slice %5 {offsets = [0, 23], sizes = [8, 1], strides = [1, 1]} : vector<8x25xf32> to vector<8x1xf32>
    %150 = vector.broadcast %149 : vector<8x1xf32> to vector<8x256xf32>
    %151 = arith.mulf %33, %150 : vector<8x256xf32>
    %152 = arith.addf %148, %151 : vector<8x256xf32>
    %153 = vector.extract_strided_slice %5 {offsets = [0, 24], sizes = [8, 1], strides = [1, 1]} : vector<8x25xf32> to vector<8x1xf32>
    %154 = vector.broadcast %153 : vector<8x1xf32> to vector<8x256xf32>
    %155 = arith.mulf %37, %154 : vector<8x256xf32>
    %156 = arith.addf %152, %155 : vector<8x256xf32>
    %c224_i32 = arith.constant 224 : i32
    %157 = tpu.dynamic_rotate %156 by %c224_i32 dim 1 : vector<8x256xf32>, i32 -> vector<8x256xf32>
    %c224_i32_29 = arith.constant 224 : i32
    %158 = vector.broadcast %c224_i32_29 : i32 to vector<1x256xi32>
    %159 = arith.cmpi slt, %0, %158 : vector<1x256xi32>
    %cst_30 = arith.constant 0.000000e+00 : f32
    %160 = vector.shape_cast %159 : vector<1x256xi1> to vector<1x256xi1>
    %161 = vector.broadcast %160 : vector<1x256xi1> to vector<8x256xi1>
    %162 = vector.broadcast %cst_30 : f32 to vector<8x256xf32>
    %163 = arith.select %161, %157, %162 : vector<8x256xi1>, vector<8x256xf32>
    %164 = arith.addf %137, %163 : vector<8x256xf32>
    %165 = vector.broadcast %8 : vector<8x1xf32> to vector<8x256xf32>
    %166 = arith.addf %164, %165 : vector<8x256xf32>
    %167 = arith.negf %166 : vector<8x256xf32>
    %168 = math.exp %167 : vector<8x256xf32>
    %cst_31 = arith.constant 1.000000e+00 : f32
    %169 = vector.broadcast %cst_31 : f32 to vector<8x256xf32>
    %170 = arith.addf %169, %168 : vector<8x256xf32>
    %171 = arith.divf %169, %170 : vector<8x256xf32>
    %172 = arith.mulf %166, %171 : vector<8x256xf32>
    %cst_32 = arith.constant dense<0.000000e+00> : vector<8x256xf32>
    %173 = tpu.matmul %3, %21, %cst_32 {dimension_numbers = #tpu.dot_dimension_numbers<[1], [0], [0], [1], [0, 0, 1, 1], [], []>} : vector<8x8xf32>, vector<8x256xf32>, vector<8x256xf32> -> vector<8x256xf32>
    %cst_33 = arith.constant dense<0.000000e+00> : vector<8x256xf32>
    %174 = tpu.matmul %4, %172, %cst_33 {dimension_numbers = #tpu.dot_dimension_numbers<[1], [0], [0], [1], [0, 0, 1, 1], [], []>} : vector<8x8xf32>, vector<8x256xf32>, vector<8x256xf32> -> vector<8x256xf32>
    %175 = arith.addf %173, %174 : vector<8x256xf32>
    %176 = vector.broadcast %9 : vector<8x1xf32> to vector<8x256xf32>
    %177 = arith.addf %175, %176 : vector<8x256xf32>
    %c2_i32_34 = arith.constant 2 : i32
    %178 = tpu.dynamic_rotate %177 by %c2_i32_34 dim 1 : vector<8x256xf32>, i32 -> vector<8x256xf32>
    %179 = vector.extract_strided_slice %1 {offsets = [0, 0], sizes = [1, 256], strides = [1, 1]} : vector<5x256xf32> to vector<1x256xf32>
    %180 = vector.broadcast %179 : vector<1x256xf32> to vector<8x256xf32>
    %181 = arith.mulf %178, %180 : vector<8x256xf32>
    %c1_i32_35 = arith.constant 1 : i32
    %182 = tpu.dynamic_rotate %177 by %c1_i32_35 dim 1 : vector<8x256xf32>, i32 -> vector<8x256xf32>
    %183 = vector.extract_strided_slice %1 {offsets = [1, 0], sizes = [1, 256], strides = [1, 1]} : vector<5x256xf32> to vector<1x256xf32>
    %184 = vector.broadcast %183 : vector<1x256xf32> to vector<8x256xf32>
    %185 = arith.mulf %182, %184 : vector<8x256xf32>
    %c255_i32_36 = arith.constant 255 : i32
    %186 = tpu.dynamic_rotate %177 by %c255_i32_36 dim 1 : vector<8x256xf32>, i32 -> vector<8x256xf32>
    %187 = vector.extract_strided_slice %1 {offsets = [3, 0], sizes = [1, 256], strides = [1, 1]} : vector<5x256xf32> to vector<1x256xf32>
    %188 = vector.broadcast %187 : vector<1x256xf32> to vector<8x256xf32>
    %189 = arith.mulf %186, %188 : vector<8x256xf32>
    %c254_i32_37 = arith.constant 254 : i32
    %190 = tpu.dynamic_rotate %177 by %c254_i32_37 dim 1 : vector<8x256xf32>, i32 -> vector<8x256xf32>
    %191 = vector.extract_strided_slice %1 {offsets = [4, 0], sizes = [1, 256], strides = [1, 1]} : vector<5x256xf32> to vector<1x256xf32>
    %192 = vector.broadcast %191 : vector<1x256xf32> to vector<8x256xf32>
    %193 = arith.mulf %190, %192 : vector<8x256xf32>
    %194 = vector.extract_strided_slice %6 {offsets = [0, 0], sizes = [8, 1], strides = [1, 1]} : vector<8x25xf32> to vector<8x1xf32>
    %195 = vector.broadcast %194 : vector<8x1xf32> to vector<8x256xf32>
    %196 = arith.mulf %181, %195 : vector<8x256xf32>
    %197 = vector.extract_strided_slice %6 {offsets = [0, 1], sizes = [8, 1], strides = [1, 1]} : vector<8x25xf32> to vector<8x1xf32>
    %198 = vector.broadcast %197 : vector<8x1xf32> to vector<8x256xf32>
    %199 = arith.mulf %185, %198 : vector<8x256xf32>
    %200 = arith.addf %196, %199 : vector<8x256xf32>
    %201 = vector.extract_strided_slice %6 {offsets = [0, 2], sizes = [8, 1], strides = [1, 1]} : vector<8x25xf32> to vector<8x1xf32>
    %202 = vector.broadcast %201 : vector<8x1xf32> to vector<8x256xf32>
    %203 = arith.mulf %177, %202 : vector<8x256xf32>
    %204 = arith.addf %200, %203 : vector<8x256xf32>
    %205 = vector.extract_strided_slice %6 {offsets = [0, 3], sizes = [8, 1], strides = [1, 1]} : vector<8x25xf32> to vector<8x1xf32>
    %206 = vector.broadcast %205 : vector<8x1xf32> to vector<8x256xf32>
    %207 = arith.mulf %189, %206 : vector<8x256xf32>
    %208 = arith.addf %204, %207 : vector<8x256xf32>
    %209 = vector.extract_strided_slice %6 {offsets = [0, 4], sizes = [8, 1], strides = [1, 1]} : vector<8x25xf32> to vector<8x1xf32>
    %210 = vector.broadcast %209 : vector<8x1xf32> to vector<8x256xf32>
    %211 = arith.mulf %193, %210 : vector<8x256xf32>
    %212 = arith.addf %208, %211 : vector<8x256xf32>
    %c32_i32_38 = arith.constant 32 : i32
    %213 = tpu.dynamic_rotate %212 by %c32_i32_38 dim 1 : vector<8x256xf32>, i32 -> vector<8x256xf32>
    %c32_i32_39 = arith.constant 32 : i32
    %214 = vector.broadcast %c32_i32_39 : i32 to vector<1x256xi32>
    %215 = arith.cmpi sge, %0, %214 : vector<1x256xi32>
    %cst_40 = arith.constant 0.000000e+00 : f32
    %216 = vector.shape_cast %215 : vector<1x256xi1> to vector<1x256xi1>
    %217 = vector.broadcast %216 : vector<1x256xi1> to vector<8x256xi1>
    %218 = vector.broadcast %cst_40 : f32 to vector<8x256xf32>
    %219 = arith.select %217, %213, %218 : vector<8x256xi1>, vector<8x256xf32>
    %220 = vector.extract_strided_slice %6 {offsets = [0, 5], sizes = [8, 1], strides = [1, 1]} : vector<8x25xf32> to vector<8x1xf32>
    %221 = vector.broadcast %220 : vector<8x1xf32> to vector<8x256xf32>
    %222 = arith.mulf %181, %221 : vector<8x256xf32>
    %223 = vector.extract_strided_slice %6 {offsets = [0, 6], sizes = [8, 1], strides = [1, 1]} : vector<8x25xf32> to vector<8x1xf32>
    %224 = vector.broadcast %223 : vector<8x1xf32> to vector<8x256xf32>
    %225 = arith.mulf %185, %224 : vector<8x256xf32>
    %226 = arith.addf %222, %225 : vector<8x256xf32>
    %227 = vector.extract_strided_slice %6 {offsets = [0, 7], sizes = [8, 1], strides = [1, 1]} : vector<8x25xf32> to vector<8x1xf32>
    %228 = vector.broadcast %227 : vector<8x1xf32> to vector<8x256xf32>
    %229 = arith.mulf %177, %228 : vector<8x256xf32>
    %230 = arith.addf %226, %229 : vector<8x256xf32>
    %231 = vector.extract_strided_slice %6 {offsets = [0, 8], sizes = [8, 1], strides = [1, 1]} : vector<8x25xf32> to vector<8x1xf32>
    %232 = vector.broadcast %231 : vector<8x1xf32> to vector<8x256xf32>
    %233 = arith.mulf %189, %232 : vector<8x256xf32>
    %234 = arith.addf %230, %233 : vector<8x256xf32>
    %235 = vector.extract_strided_slice %6 {offsets = [0, 9], sizes = [8, 1], strides = [1, 1]} : vector<8x25xf32> to vector<8x1xf32>
    %236 = vector.broadcast %235 : vector<8x1xf32> to vector<8x256xf32>
    %237 = arith.mulf %193, %236 : vector<8x256xf32>
    %238 = arith.addf %234, %237 : vector<8x256xf32>
    %c16_i32_41 = arith.constant 16 : i32
    %239 = tpu.dynamic_rotate %238 by %c16_i32_41 dim 1 : vector<8x256xf32>, i32 -> vector<8x256xf32>
    %c16_i32_42 = arith.constant 16 : i32
    %240 = vector.broadcast %c16_i32_42 : i32 to vector<1x256xi32>
    %241 = arith.cmpi sge, %0, %240 : vector<1x256xi32>
    %cst_43 = arith.constant 0.000000e+00 : f32
    %242 = vector.shape_cast %241 : vector<1x256xi1> to vector<1x256xi1>
    %243 = vector.broadcast %242 : vector<1x256xi1> to vector<8x256xi1>
    %244 = vector.broadcast %cst_43 : f32 to vector<8x256xf32>
    %245 = arith.select %243, %239, %244 : vector<8x256xi1>, vector<8x256xf32>
    %246 = arith.addf %219, %245 : vector<8x256xf32>
    %247 = vector.extract_strided_slice %6 {offsets = [0, 10], sizes = [8, 1], strides = [1, 1]} : vector<8x25xf32> to vector<8x1xf32>
    %248 = vector.broadcast %247 : vector<8x1xf32> to vector<8x256xf32>
    %249 = arith.mulf %181, %248 : vector<8x256xf32>
    %250 = vector.extract_strided_slice %6 {offsets = [0, 11], sizes = [8, 1], strides = [1, 1]} : vector<8x25xf32> to vector<8x1xf32>
    %251 = vector.broadcast %250 : vector<8x1xf32> to vector<8x256xf32>
    %252 = arith.mulf %185, %251 : vector<8x256xf32>
    %253 = arith.addf %249, %252 : vector<8x256xf32>
    %254 = vector.extract_strided_slice %6 {offsets = [0, 12], sizes = [8, 1], strides = [1, 1]} : vector<8x25xf32> to vector<8x1xf32>
    %255 = vector.broadcast %254 : vector<8x1xf32> to vector<8x256xf32>
    %256 = arith.mulf %177, %255 : vector<8x256xf32>
    %257 = arith.addf %253, %256 : vector<8x256xf32>
    %258 = vector.extract_strided_slice %6 {offsets = [0, 13], sizes = [8, 1], strides = [1, 1]} : vector<8x25xf32> to vector<8x1xf32>
    %259 = vector.broadcast %258 : vector<8x1xf32> to vector<8x256xf32>
    %260 = arith.mulf %189, %259 : vector<8x256xf32>
    %261 = arith.addf %257, %260 : vector<8x256xf32>
    %262 = vector.extract_strided_slice %6 {offsets = [0, 14], sizes = [8, 1], strides = [1, 1]} : vector<8x25xf32> to vector<8x1xf32>
    %263 = vector.broadcast %262 : vector<8x1xf32> to vector<8x256xf32>
    %264 = arith.mulf %193, %263 : vector<8x256xf32>
    %265 = arith.addf %261, %264 : vector<8x256xf32>
    %266 = arith.addf %246, %265 : vector<8x256xf32>
    %267 = vector.extract_strided_slice %6 {offsets = [0, 15], sizes = [8, 1], strides = [1, 1]} : vector<8x25xf32> to vector<8x1xf32>
    %268 = vector.broadcast %267 : vector<8x1xf32> to vector<8x256xf32>
    %269 = arith.mulf %181, %268 : vector<8x256xf32>
    %270 = vector.extract_strided_slice %6 {offsets = [0, 16], sizes = [8, 1], strides = [1, 1]} : vector<8x25xf32> to vector<8x1xf32>
    %271 = vector.broadcast %270 : vector<8x1xf32> to vector<8x256xf32>
    %272 = arith.mulf %185, %271 : vector<8x256xf32>
    %273 = arith.addf %269, %272 : vector<8x256xf32>
    %274 = vector.extract_strided_slice %6 {offsets = [0, 17], sizes = [8, 1], strides = [1, 1]} : vector<8x25xf32> to vector<8x1xf32>
    %275 = vector.broadcast %274 : vector<8x1xf32> to vector<8x256xf32>
    %276 = arith.mulf %177, %275 : vector<8x256xf32>
    %277 = arith.addf %273, %276 : vector<8x256xf32>
    %278 = vector.extract_strided_slice %6 {offsets = [0, 18], sizes = [8, 1], strides = [1, 1]} : vector<8x25xf32> to vector<8x1xf32>
    %279 = vector.broadcast %278 : vector<8x1xf32> to vector<8x256xf32>
    %280 = arith.mulf %189, %279 : vector<8x256xf32>
    %281 = arith.addf %277, %280 : vector<8x256xf32>
    %282 = vector.extract_strided_slice %6 {offsets = [0, 19], sizes = [8, 1], strides = [1, 1]} : vector<8x25xf32> to vector<8x1xf32>
    %283 = vector.broadcast %282 : vector<8x1xf32> to vector<8x256xf32>
    %284 = arith.mulf %193, %283 : vector<8x256xf32>
    %285 = arith.addf %281, %284 : vector<8x256xf32>
    %c240_i32_44 = arith.constant 240 : i32
    %286 = tpu.dynamic_rotate %285 by %c240_i32_44 dim 1 : vector<8x256xf32>, i32 -> vector<8x256xf32>
    %c240_i32_45 = arith.constant 240 : i32
    %287 = vector.broadcast %c240_i32_45 : i32 to vector<1x256xi32>
    %288 = arith.cmpi slt, %0, %287 : vector<1x256xi32>
    %cst_46 = arith.constant 0.000000e+00 : f32
    %289 = vector.shape_cast %288 : vector<1x256xi1> to vector<1x256xi1>
    %290 = vector.broadcast %289 : vector<1x256xi1> to vector<8x256xi1>
    %291 = vector.broadcast %cst_46 : f32 to vector<8x256xf32>
    %292 = arith.select %290, %286, %291 : vector<8x256xi1>, vector<8x256xf32>
    %293 = arith.addf %266, %292 : vector<8x256xf32>
    %294 = vector.extract_strided_slice %6 {offsets = [0, 20], sizes = [8, 1], strides = [1, 1]} : vector<8x25xf32> to vector<8x1xf32>
    %295 = vector.broadcast %294 : vector<8x1xf32> to vector<8x256xf32>
    %296 = arith.mulf %181, %295 : vector<8x256xf32>
    %297 = vector.extract_strided_slice %6 {offsets = [0, 21], sizes = [8, 1], strides = [1, 1]} : vector<8x25xf32> to vector<8x1xf32>
    %298 = vector.broadcast %297 : vector<8x1xf32> to vector<8x256xf32>
    %299 = arith.mulf %185, %298 : vector<8x256xf32>
    %300 = arith.addf %296, %299 : vector<8x256xf32>
    %301 = vector.extract_strided_slice %6 {offsets = [0, 22], sizes = [8, 1], strides = [1, 1]} : vector<8x25xf32> to vector<8x1xf32>
    %302 = vector.broadcast %301 : vector<8x1xf32> to vector<8x256xf32>
    %303 = arith.mulf %177, %302 : vector<8x256xf32>
    %304 = arith.addf %300, %303 : vector<8x256xf32>
    %305 = vector.extract_strided_slice %6 {offsets = [0, 23], sizes = [8, 1], strides = [1, 1]} : vector<8x25xf32> to vector<8x1xf32>
    %306 = vector.broadcast %305 : vector<8x1xf32> to vector<8x256xf32>
    %307 = arith.mulf %189, %306 : vector<8x256xf32>
    %308 = arith.addf %304, %307 : vector<8x256xf32>
    %309 = vector.extract_strided_slice %6 {offsets = [0, 24], sizes = [8, 1], strides = [1, 1]} : vector<8x25xf32> to vector<8x1xf32>
    %310 = vector.broadcast %309 : vector<8x1xf32> to vector<8x256xf32>
    %311 = arith.mulf %193, %310 : vector<8x256xf32>
    %312 = arith.addf %308, %311 : vector<8x256xf32>
    %c224_i32_47 = arith.constant 224 : i32
    %313 = tpu.dynamic_rotate %312 by %c224_i32_47 dim 1 : vector<8x256xf32>, i32 -> vector<8x256xf32>
    %c224_i32_48 = arith.constant 224 : i32
    %314 = vector.broadcast %c224_i32_48 : i32 to vector<1x256xi32>
    %315 = arith.cmpi slt, %0, %314 : vector<1x256xi32>
    %cst_49 = arith.constant 0.000000e+00 : f32
    %316 = vector.shape_cast %315 : vector<1x256xi1> to vector<1x256xi1>
    %317 = vector.broadcast %316 : vector<1x256xi1> to vector<8x256xi1>
    %318 = vector.broadcast %cst_49 : f32 to vector<8x256xf32>
    %319 = arith.select %317, %313, %318 : vector<8x256xi1>, vector<8x256xf32>
    %320 = arith.addf %293, %319 : vector<8x256xf32>
    %321 = vector.broadcast %10 : vector<8x1xf32> to vector<8x256xf32>
    %322 = arith.addf %320, %321 : vector<8x256xf32>
    %323 = vector.extract_strided_slice %12 {offsets = [0, 0], sizes = [8, 256], strides = [1, 1]} : vector<16x256xf32> to vector<8x256xf32>
    %324 = arith.addf %177, %323 : vector<8x256xf32>
    %c0_50 = arith.constant 0 : index
    %c0_51 = arith.constant 0 : index
    %c0_52 = arith.constant 0 : index
    %325 = vector.load %arg12[%c0_50, %c0_51, %c0_52] : memref<1x16x256xf32, #tpu.memory_space<vmem>>, vector<1x8x256xf32>
    %326 = vector.shape_cast %325 : vector<1x8x256xf32> to vector<8x256xf32>
    %327 = vector.shape_cast %324 : vector<8x256xf32> to vector<1x8x256xf32>
    tpu.vector_store %arg12[%c0_50, %c0_51, %c0_52], %327 {strides = array<i32>} : memref<1x16x256xf32, #tpu.memory_space<vmem>>, vector<1x8x256xf32>,
    %328 = vector.extract_strided_slice %12 {offsets = [8, 0], sizes = [8, 256], strides = [1, 1]} : vector<16x256xf32> to vector<8x256xf32>
    %329 = arith.addf %322, %328 : vector<8x256xf32>
    %c0_53 = arith.constant 0 : index
    %c8 = arith.constant 8 : index
    %c0_54 = arith.constant 0 : index
    %330 = vector.load %arg12[%c0_53, %c8, %c0_54] : memref<1x16x256xf32, #tpu.memory_space<vmem>>, vector<1x8x256xf32>
    %331 = vector.shape_cast %330 : vector<1x8x256xf32> to vector<8x256xf32>
    %332 = vector.shape_cast %329 : vector<8x256xf32> to vector<1x8x256xf32>
    tpu.vector_store %arg12[%c0_53, %c8, %c0_54], %332 {strides = array<i32>} : memref<1x16x256xf32, #tpu.memory_space<vmem>>, vector<1x8x256xf32>,
    return
  }
  func.func @transform_0(%arg0: i32) -> (i32, i32, i32) {
    %c0_i32 = arith.constant 0 : i32
    %c0_i32_0 = arith.constant 0 : i32
    %c0_i32_1 = arith.constant 0 : i32
    return %arg0, %c0_i32, %c0_i32_0 : i32, i32, i32
  }
  func.func @transform_1(%arg0: i32) -> (i32, i32) {
    %c0_i32 = arith.constant 0 : i32
    %c0_i32_0 = arith.constant 0 : i32
    %c0_i32_1 = arith.constant 0 : i32
    return %c0_i32, %c0_i32_0 : i32, i32
  }
  func.func @transform_2(%arg0: i32) -> (i32, i32) {
    %c0_i32 = arith.constant 0 : i32
    %c0_i32_0 = arith.constant 0 : i32
    %c0_i32_1 = arith.constant 0 : i32
    return %c0_i32, %c0_i32_0 : i32, i32
  }
  func.func @transform_3(%arg0: i32) -> (i32, i32) {
    %c0_i32 = arith.constant 0 : i32
    %c0_i32_0 = arith.constant 0 : i32
    %c0_i32_1 = arith.constant 0 : i32
    return %c0_i32, %c0_i32_0 : i32, i32
  }
  func.func @transform_4(%arg0: i32) -> (i32, i32) {
    %c0_i32 = arith.constant 0 : i32
    %c0_i32_0 = arith.constant 0 : i32
    %c0_i32_1 = arith.constant 0 : i32
    return %c0_i32, %c0_i32_0 : i32, i32
  }
  func.func @transform_5(%arg0: i32) -> (i32, i32) {
    %c0_i32 = arith.constant 0 : i32
    %c0_i32_0 = arith.constant 0 : i32
    %c0_i32_1 = arith.constant 0 : i32
    return %c0_i32, %c0_i32_0 : i32, i32
  }
  func.func @transform_6(%arg0: i32) -> (i32, i32) {
    %c0_i32 = arith.constant 0 : i32
    %c0_i32_0 = arith.constant 0 : i32
    %c0_i32_1 = arith.constant 0 : i32
    return %c0_i32, %c0_i32_0 : i32, i32
  }
  func.func @transform_7(%arg0: i32) -> (i32, i32) {
    %c0_i32 = arith.constant 0 : i32
    %c0_i32_0 = arith.constant 0 : i32
    %c0_i32_1 = arith.constant 0 : i32
    return %c0_i32, %c0_i32_0 : i32, i32
  }
  func.func @transform_8(%arg0: i32) -> (i32, i32) {
    %c0_i32 = arith.constant 0 : i32
    %c0_i32_0 = arith.constant 0 : i32
    %c0_i32_1 = arith.constant 0 : i32
    return %c0_i32, %c0_i32_0 : i32, i32
  }
  func.func @transform_9(%arg0: i32) -> (i32, i32) {
    %c0_i32 = arith.constant 0 : i32
    %c0_i32_0 = arith.constant 0 : i32
    %c0_i32_1 = arith.constant 0 : i32
    return %c0_i32, %c0_i32_0 : i32, i32
  }
  func.func @transform_10(%arg0: i32) -> (i32, i32) {
    %c0_i32 = arith.constant 0 : i32
    %c0_i32_0 = arith.constant 0 : i32
    %c0_i32_1 = arith.constant 0 : i32
    return %c0_i32, %c0_i32_0 : i32, i32
  }
  func.func @transform_11(%arg0: i32) -> (i32, i32, i32) {
    %c0_i32 = arith.constant 0 : i32
    %c0_i32_0 = arith.constant 0 : i32
    %c0_i32_1 = arith.constant 0 : i32
    return %arg0, %c0_i32, %c0_i32_0 : i32, i32, i32
  }
}

</mosaic_0001>

<llo_original>
// kernel: ghost_bottleneck_forward.1
$region0: #{ghost_bottleneck_forward.1}
  #allocation0 [shape = 'u32[]', space=smem, size = 0x4, offset = 0x4, fixed_abs, tag = 'smem constant byte address 0x4 - core index']
  #allocation1 [shape = 'u32[144,128]{1,0:T(1,128)}', space=vmem, size = 0x12000, scoped, tag = 'internal scratch']
  %s0 = inlined_call_operand.vmem [shape: f32[2,16,256], index: 0, kind: input, shape index: {}]
  %s1 = inlined_call_operand.vmem [shape: f32[8,16], index: 1, kind: input, shape index: {}]
  %s2 = inlined_call_operand.vmem [shape: f32[8,1], index: 2, kind: input, shape index: {}]
  %s3 = inlined_call_operand.vmem [shape: f32[8,25], index: 3, kind: input, shape index: {}]
  %s4 = inlined_call_operand.vmem [shape: f32[8,1], index: 4, kind: input, shape index: {}]
  %s5 = inlined_call_operand.vmem [shape: f32[8,8], index: 5, kind: input, shape index: {}]
  %s6 = inlined_call_operand.vmem [shape: f32[8,8], index: 6, kind: input, shape index: {}]
  %s7 = inlined_call_operand.vmem [shape: f32[8,1], index: 7, kind: input, shape index: {}]
  %s8 = inlined_call_operand.vmem [shape: f32[8,25], index: 8, kind: input, shape index: {}]
  %s9 = inlined_call_operand.vmem [shape: f32[8,1], index: 9, kind: input, shape index: {}]
  %s10 = inlined_call_operand.vmem [shape: f32[5,256], index: 10, kind: input, shape index: {}]
  %s11 = inlined_call_operand.vmem [shape: f32[2,16,256], index: 11, kind: output, shape index: {}]
  %s12 = sld [smem:[#allocation0]]
  $region77: #{ghost_bottleneck_forward.1} parent=0
    _
  %s14 = ssub.s32 1, %s12
  %s15 = scalar_select 0, %s14, %s12
  loop: start=0, step=1, limit=4
  $region2: #{ghost_bottleneck_forward.1} parent=0 // loop_pre_header
    _
  $region3: #{ghost_bottleneck_forward.1} parent=0 // loop_header
    %s17 = sphi 0, %s21
    %p18 = scmp.ge.s32.totalorder %s17, 4
    %s27 = sphi 0, %s29
    %s30 = sphi 0, %s27
    %s31 = sphi 0, %s30
    %s47 = sphi 0, %s31
    %s51 = sphi 0, %s51
    %s53 = sphi 0, %s51
    %s54 = sphi 0, %s53
    %s68 = sphi 0, %s54
    %s72 = sphi 0, %s72
    %s74 = sphi 0, %s72
    %s75 = sphi 0, %s74
    %s89 = sphi 0, %s75
    %s93 = sphi 0, %s93
    %s95 = sphi 0, %s93
    %s96 = sphi 0, %s95
    %s110 = sphi 0, %s96
    %s114 = sphi 0, %s114
    %s116 = sphi 0, %s114
    %s117 = sphi 0, %s116
    %s131 = sphi 0, %s117
    %s135 = sphi 0, %s135
    %s137 = sphi 0, %s135
    %s138 = sphi 0, %s137
    %s152 = sphi 0, %s138
    %s156 = sphi 0, %s156
    %s158 = sphi 0, %s156
    %s159 = sphi 0, %s158
    %s173 = sphi 0, %s159
    %s177 = sphi 0, %s177
    %s179 = sphi 0, %s177
    %s180 = sphi 0, %s179
    %s194 = sphi 0, %s180
    %s198 = sphi 0, %s198
    %s200 = sphi 0, %s198
    %s201 = sphi 0, %s200
    %s215 = sphi 0, %s201
    %s219 = sphi 0, %s219
    %s221 = sphi 0, %s219
    %s222 = sphi 0, %s221
    %s236 = sphi 0, %s222
    %s240 = sphi 0, %s240
    %s242 = sphi 0, %s240
    %s243 = sphi 0, %s242
    %s257 = sphi 0, %s243
    %s263 = sphi 0, %s265
    %s266 = sphi 0, %s263
    %s267 = sphi 0, %s266
    %s283 = sphi 0, %s267
  $region4: #{ghost_bottleneck_forward.1} parent=0 // loop_header_branch
    %20 = sbr.rel (%p18) target = $region8
  $region5: #{ghost_bottleneck_forward.1} parent=0 // loop_body
    %s22 = ssub.s32 %s17, 1
    %s23 = ssub.s32 %s17, 2
    %s24 = sadd.s32 %s17, 1
    %s25 = ssub.s32 %s17, %s24
    %p26 = scmp.eq.s32.totalorder %s25, 0
    %s28 = sadd.s32 %s27, 1
    %s29 = scalar_select %p26, %s27, %s28
    %p32 = pneg %p26
    %p33 = scmp.eq.s32.totalorder %s17, 1
    %p34 = por %p32, %p33
    %p35 = scmp.ne.s32.totalorder %s27, %s30
    %p36 = scmp.eq.s32.totalorder %s17, 0
    %p37 = por %p35, %p36
    %p38 = scmp.ne.s32.totalorder %s27, %s30
    %p39 = scmp.eq.s32.totalorder %s22, 1
    %p40 = por %p38, %p39
    %p41 = scmp.ne.s32.totalorder %s30, %s31
    %p42 = scmp.eq.s32.totalorder %s22, 0
    %p43 = por %p41, %p42
    %p44 = scmp.ne.s32.totalorder %s30, %s31
    %p45 = scmp.eq.s32.totalorder %s23, 1
    %p46 = por %p44, %p45
    %p48 = scmp.ne.s32.totalorder %s31, %s47
    %p49 = scmp.eq.s32.totalorder %s23, 0
    %p50 = por %p48, %p49
    %s52 = sadd.s32 %s51, 1
    %p55 = scmp.eq.s32.totalorder %s17, 1
    %p56 = scmp.ne.s32.totalorder %s51, %s53
    %p57 = scmp.eq.s32.totalorder %s17, 0
    %p58 = por %p56, %p57
    %p59 = scmp.ne.s32.totalorder %s51, %s53
    %p60 = scmp.eq.s32.totalorder %s22, 1
    %p61 = por %p59, %p60
    %p62 = scmp.ne.s32.totalorder %s53, %s54
    %p63 = scmp.eq.s32.totalorder %s22, 0
    %p64 = por %p62, %p63
    %p65 = scmp.ne.s32.totalorder %s53, %s54
    %p66 = scmp.eq.s32.totalorder %s23, 1
    %p67 = por %p65, %p66
    %p69 = scmp.ne.s32.totalorder %s54, %s68
    %p70 = scmp.eq.s32.totalorder %s23, 0
    %p71 = por %p69, %p70
    %s73 = sadd.s32 %s72, 1
    %p76 = scmp.eq.s32.totalorder %s17, 1
    %p77 = scmp.ne.s32.totalorder %s72, %s74
    %p78 = scmp.eq.s32.totalorder %s17, 0
    %p79 = por %p77, %p78
    %p80 = scmp.ne.s32.totalorder %s72, %s74
    %p81 = scmp.eq.s32.totalorder %s22, 1
    %p82 = por %p80, %p81
    %p83 = scmp.ne.s32.totalorder %s74, %s75
    %p84 = scmp.eq.s32.totalorder %s22, 0
    %p85 = por %p83, %p84
    %p86 = scmp.ne.s32.totalorder %s74, %s75
    %p87 = scmp.eq.s32.totalorder %s23, 1
    %p88 = por %p86, %p87
    %p90 = scmp.ne.s32.totalorder %s75, %s89
    %p91 = scmp.eq.s32.totalorder %s23, 0
    %p92 = por %p90, %p91
    %s94 = sadd.s32 %s93, 1
    %p97 = scmp.eq.s32.totalorder %s17, 1
    %p98 = scmp.ne.s32.totalorder %s93, %s95
    %p99 = scmp.eq.s32.totalorder %s17, 0
    %p100 = por %p98, %p99
    %p101 = scmp.ne.s32.totalorder %s93, %s95
    %p102 = scmp.eq.s32.totalorder %s22, 1
    %p103 = por %p101, %p102
    %p104 = scmp.ne.s32.totalorder %s95, %s96
    %p105 = scmp.eq.s32.totalorder %s22, 0
    %p106 = por %p104, %p105
    %p107 = scmp.ne.s32.totalorder %s95, %s96
    %p108 = scmp.eq.s32.totalorder %s23, 1
    %p109 = por %p107, %p108
    %p111 = scmp.ne.s32.totalorder %s96, %s110
    %p112 = scmp.eq.s32.totalorder %s23, 0
    %p113 = por %p111, %p112
    %s115 = sadd.s32 %s114, 1
    %p118 = scmp.eq.s32.totalorder %s17, 1
    %p119 = scmp.ne.s32.totalorder %s114, %s116
    %p120 = scmp.eq.s32.totalorder %s17, 0
    %p121 = por %p119, %p120
    %p122 = scmp.ne.s32.totalorder %s114, %s116
    %p123 = scmp.eq.s32.totalorder %s22, 1
    %p124 = por %p122, %p123
    %p125 = scmp.ne.s32.totalorder %s116, %s117
    %p126 = scmp.eq.s32.totalorder %s22, 0
    %p127 = por %p125, %p126
    %p128 = scmp.ne.s32.totalorder %s116, %s117
    %p129 = scmp.eq.s32.totalorder %s23, 1
    %p130 = por %p128, %p129
    %p132 = scmp.ne.s32.totalorder %s117, %s131
    %p133 = scmp.eq.s32.totalorder %s23, 0
    %p134 = por %p132, %p133
    %s136 = sadd.s32 %s135, 1
    %p139 = scmp.eq.s32.totalorder %s17, 1
    %p140 = scmp.ne.s32.totalorder %s135, %s137
    %p141 = scmp.eq.s32.totalorder %s17, 0
    %p142 = por %p140, %p141
    %p143 = scmp.ne.s32.totalorder %s135, %s137
    %p144 = scmp.eq.s32.totalorder %s22, 1
    %p145 = por %p143, %p144
    %p146 = scmp.ne.s32.totalorder %s137, %s138
    %p147 = scmp.eq.s32.totalorder %s22, 0
    %p148 = por %p146, %p147
    %p149 = scmp.ne.s32.totalorder %s137, %s138
    %p150 = scmp.eq.s32.totalorder %s23, 1
    %p151 = por %p149, %p150
    %p153 = scmp.ne.s32.totalorder %s138, %s152
    %p154 = scmp.eq.s32.totalorder %s23, 0
    %p155 = por %p153, %p154
    %s157 = sadd.s32 %s156, 1
    %p160 = scmp.eq.s32.totalorder %s17, 1
    %p161 = scmp.ne.s32.totalorder %s156, %s158
    %p162 = scmp.eq.s32.totalorder %s17, 0
    %p163 = por %p161, %p162
    %p164 = scmp.ne.s32.totalorder %s156, %s158
    %p165 = scmp.eq.s32.totalorder %s22, 1
    %p166 = por %p164, %p165
    %p167 = scmp.ne.s32.totalorder %s158, %s159
    %p168 = scmp.eq.s32.totalorder %s22, 0
    %p169 = por %p167, %p168
    %p170 = scmp.ne.s32.totalorder %s158, %s159
    %p171 = scmp.eq.s32.totalorder %s23, 1
    %p172 = por %p170, %p171
    %p174 = scmp.ne.s32.totalorder %s159, %s173
    %p175 = scmp.eq.s32.totalorder %s23, 0
    %p176 = por %p174, %p175
    %s178 = sadd.s32 %s177, 1
    %p181 = scmp.eq.s32.totalorder %s17, 1
    %p182 = scmp.ne.s32.totalorder %s177, %s179
    %p183 = scmp.eq.s32.totalorder %s17, 0
    %p184 = por %p182, %p183
    %p185 = scmp.ne.s32.totalorder %s177, %s179
    %p186 = scmp.eq.s32.totalorder %s22, 1
    %p187 = por %p185, %p186
    %p188 = scmp.ne.s32.totalorder %s179, %s180
    %p189 = scmp.eq.s32.totalorder %s22, 0
    %p190 = por %p188, %p189
    %p191 = scmp.ne.s32.totalorder %s179, %s180
    %p192 = scmp.eq.s32.totalorder %s23, 1
    %p193 = por %p191, %p192
    %p195 = scmp.ne.s32.totalorder %s180, %s194
    %p196 = scmp.eq.s32.totalorder %s23, 0
    %p197 = por %p195, %p196
    %s199 = sadd.s32 %s198, 1
    %p202 = scmp.eq.s32.totalorder %s17, 1
    %p203 = scmp.ne.s32.totalorder %s198, %s200
    %p204 = scmp.eq.s32.totalorder %s17, 0
    %p205 = por %p203, %p204
    %p206 = scmp.ne.s32.totalorder %s198, %s200
    %p207 = scmp.eq.s32.totalorder %s22, 1
    %p208 = por %p206, %p207
    %p209 = scmp.ne.s32.totalorder %s200, %s201
    %p210 = scmp.eq.s32.totalorder %s22, 0
    %p211 = por %p209, %p210
    %p212 = scmp.ne.s32.totalorder %s200, %s201
    %p213 = scmp.eq.s32.totalorder %s23, 1
    %p214 = por %p212, %p213
    %p216 = scmp.ne.s32.totalorder %s201, %s215
    %p217 = scmp.eq.s32.totalorder %s23, 0
    %p218 = por %p216, %p217
    %s220 = sadd.s32 %s219, 1
    %p223 = scmp.eq.s32.totalorder %s17, 1
    %p224 = scmp.ne.s32.totalorder %s219, %s221
    %p225 = scmp.eq.s32.totalorder %s17, 0
    %p226 = por %p224, %p225
    %p227 = scmp.ne.s32.totalorder %s219, %s221
    %p228 = scmp.eq.s32.totalorder %s22, 1
    %p229 = por %p227, %p228
    %p230 = scmp.ne.s32.totalorder %s221, %s222
    %p231 = scmp.eq.s32.totalorder %s22, 0
    %p232 = por %p230, %p231
    %p233 = scmp.ne.s32.totalorder %s221, %s222
    %p234 = scmp.eq.s32.totalorder %s23, 1
    %p235 = por %p233, %p234
    %p237 = scmp.ne.s32.totalorder %s222, %s236
    %p238 = scmp.eq.s32.totalorder %s23, 0
    %p239 = por %p237, %p238
    %s241 = sadd.s32 %s240, 1
    %p244 = scmp.eq.s32.totalorder %s17, 1
    %p245 = scmp.ne.s32.totalorder %s240, %s242
    %p246 = scmp.eq.s32.totalorder %s17, 0
    %p247 = por %p245, %p246
    %p248 = scmp.ne.s32.totalorder %s240, %s242
    %p249 = scmp.eq.s32.totalorder %s22, 1
    %p250 = por %p248, %p249
    %p251 = scmp.ne.s32.totalorder %s242, %s243
    %p252 = scmp.eq.s32.totalorder %s22, 0
    %p253 = por %p251, %p252
    %p254 = scmp.ne.s32.totalorder %s242, %s243
    %p255 = scmp.eq.s32.totalorder %s23, 1
    %p256 = por %p254, %p255
    %p258 = scmp.ne.s32.totalorder %s243, %s257
    %p259 = scmp.eq.s32.totalorder %s23, 0
    %p260 = por %p258, %p259
    %s261 = ssub.s32 %s17, %s24
    %p262 = scmp.eq.s32.totalorder %s261, 0
    %s264 = sadd.s32 %s263, 1
    %s265 = scalar_select %p262, %s263, %s264
    %p268 = pneg %p262
    %p269 = scmp.eq.s32.totalorder %s17, 1
    %p270 = por %p268, %p269
    %p271 = scmp.ne.s32.totalorder %s263, %s266
    %p272 = scmp.eq.s32.totalorder %s17, 0
    %p273 = por %p271, %p272
    %p274 = scmp.ne.s32.totalorder %s263, %s266
    %p275 = scmp.eq.s32.totalorder %s22, 1
    %p276 = por %p274, %p275
    %p277 = scmp.ne.s32.totalorder %s266, %s267
    %p278 = scmp.eq.s32.totalorder %s22, 0
    %p279 = por %p277, %p278
    %p280 = scmp.ne.s32.totalorder %s266, %s267
    %p281 = scmp.eq.s32.totalorder %s23, 1
    %p282 = por %p280, %p281
    %p284 = scmp.ne.s32.totalorder %s267, %s283
    %p285 = scmp.eq.s32.totalorder %s23, 0
    %p286 = por %p284, %p285
    %p287 = scmp.le.s32.totalorder 1, %s17
    %p288 = scmp.lt.s32.totalorder %s17, 3
    %p289 = pnand %p287, %p288
    %p290 = pneg %p289
    // Predicated region
    $region9: #{ghost_bottleneck_forward.1} parent=5 // pred_check
      _
    $region10: #{ghost_bottleneck_forward.1} parent=5 // pred_check_branch
      %292 = sbr.rel (%p289) target = $region12
    $region11: #{ghost_bottleneck_forward.1} parent=5 // pred_region
      %s293 = ssub.s32 %s17, 1
      // Predicated region
      $region13: #{ghost_bottleneck_forward.1} parent=11 // pred_check
        %p294 = pneg %p64
      $region14: #{ghost_bottleneck_forward.1} parent=11 // pred_check_branch
        %296 = sbr.rel (%p294) target = $region16
      $region15: #{ghost_bottleneck_forward.1} parent=11 // pred_region
        _
      $region16: #{ghost_bottleneck_forward.1} parent=11 // pred_fallthru
        _
      // Predicated region
      $region17: #{ghost_bottleneck_forward.1} parent=11 // pred_check
        %p297 = pneg %p85
      $region18: #{ghost_bottleneck_forward.1} parent=11 // pred_check_branch
        %299 = sbr.rel (%p297) target = $region20
      $region19: #{ghost_bottleneck_forward.1} parent=11 // pred_region
        _
      $region20: #{ghost_bottleneck_forward.1} parent=11 // pred_fallthru
        _
      // Predicated region
      $region21: #{ghost_bottleneck_forward.1} parent=11 // pred_check
        %p300 = pneg %p106
      $region22: #{ghost_bottleneck_forward.1} parent=11 // pred_check_branch
        %302 = sbr.rel (%p300) target = $region24
      $region23: #{ghost_bottleneck_forward.1} parent=11 // pred_region
        _
      $region24: #{ghost_bottleneck_forward.1} parent=11 // pred_fallthru
        _
      // Predicated region
      $region25: #{ghost_bottleneck_forward.1} parent=11 // pred_check
        %p303 = pneg %p127
      $region26: #{ghost_bottleneck_forward.1} parent=11 // pred_check_branch
        %305 = sbr.rel (%p303) target = $region28
      $region27: #{ghost_bottleneck_forward.1} parent=11 // pred_region
        _
      $region28: #{ghost_bottleneck_forward.1} parent=11 // pred_fallthru
        _
      // Predicated region
      $region29: #{ghost_bottleneck_forward.1} parent=11 // pred_check
        %p306 = pneg %p148
      $region30: #{ghost_bottleneck_forward.1} parent=11 // pred_check_branch
        %308 = sbr.rel (%p306) target = $region32
      $region31: #{ghost_bottleneck_forward.1} parent=11 // pred_region
        _
      $region32: #{ghost_bottleneck_forward.1} parent=11 // pred_fallthru
        _
      // Predicated region
      $region33: #{ghost_bottleneck_forward.1} parent=11 // pred_check
        %p309 = pneg %p169
      $region34: #{ghost_bottleneck_forward.1} parent=11 // pred_check_branch
        %311 = sbr.rel (%p309) target = $region36
      $region35: #{ghost_bottleneck_forward.1} parent=11 // pred_region
        _
      $region36: #{ghost_bottleneck_forward.1} parent=11 // pred_fallthru
        _
      // Predicated region
      $region37: #{ghost_bottleneck_forward.1} parent=11 // pred_check
        %p312 = pneg %p190
      $region38: #{ghost_bottleneck_forward.1} parent=11 // pred_check_branch
        %314 = sbr.rel (%p312) target = $region40
      $region39: #{ghost_bottleneck_forward.1} parent=11 // pred_region
        _
      $region40: #{ghost_bottleneck_forward.1} parent=11 // pred_fallthru
        _
      // Predicated region
      $region41: #{ghost_bottleneck_forward.1} parent=11 // pred_check
        %p315 = pneg %p211
      $region42: #{ghost_bottleneck_forward.1} parent=11 // pred_check_branch
        %317 = sbr.rel (%p315) target = $region44
      $region43: #{ghost_bottleneck_forward.1} parent=11 // pred_region
        _
      $region44: #{ghost_bottleneck_forward.1} parent=11 // pred_fallthru
        _
      // Predicated region
      $region45: #{ghost_bottleneck_forward.1} parent=11 // pred_check
        %p318 = pneg %p232
      $region46: #{ghost_bottleneck_forward.1} parent=11 // pred_check_branch
        %320 = sbr.rel (%p318) target = $region48
      $region47: #{ghost_bottleneck_forward.1} parent=11 // pred_region
        _
      $region48: #{ghost_bottleneck_forward.1} parent=11 // pred_fallthru
        _
      // Predicated region
      $region49: #{ghost_bottleneck_forward.1} parent=11 // pred_check
        %p321 = pneg %p253
      $region50: #{ghost_bottleneck_forward.1} parent=11 // pred_check_branch
        %323 = sbr.rel (%p321) target = $region52
      $region51: #{ghost_bottleneck_forward.1} parent=11 // pred_region
        _
      $region52: #{ghost_bottleneck_forward.1} parent=11 // pred_fallthru
        _
    $region12: #{ghost_bottleneck_forward.1} parent=5 // pred_fallthru
      _
    %p324 = scmp.lt.s32.totalorder %s17, 2
    // Predicated region
    $region53: #{ghost_bottleneck_forward.1} parent=5 // pred_check
      %p325 = pneg %p324
    $region54: #{ghost_bottleneck_forward.1} parent=5 // pred_check_branch
      %327 = sbr.rel (%p325) target = $region56
    $region55: #{ghost_bottleneck_forward.1} parent=5 // pred_region
      // Predicated region
      $region57: #{ghost_bottleneck_forward.1} parent=55 // pred_check
        %p328 = pneg %p37
      $region58: #{ghost_bottleneck_forward.1} parent=55 // pred_check_branch
        %330 = sbr.rel (%p328) target = $region60
      $region59: #{ghost_bottleneck_forward.1} parent=55 // pred_region
        %p331 = scmp.lt.s32.totalorder %s17, 1
        %s332 = scalar_select %p331, %s17, 1
        %s333 = smul.addr %s332, 4
        %s334 = smul.addr %s333, 8
        %s335 = scalar_lea.vmem %s0, %s334
      $region60: #{ghost_bottleneck_forward.1} parent=55 // pred_fallthru
        _
    $region56: #{ghost_bottleneck_forward.1} parent=5 // pred_fallthru
      _
    %p336 = scmp.le.s32.totalorder 1, %s17
    %p337 = scmp.lt.s32.totalorder %s17, 3
    %p338 = pnand %p336, %p337
    %p339 = pneg %p338
    // Predicated region
    $region61: #{ghost_bottleneck_forward.1} parent=5 // pred_check
      _
    $region62: #{ghost_bottleneck_forward.1} parent=5 // pred_check_branch
      %341 = sbr.rel (%p338) target = $region64
    $region63: #{ghost_bottleneck_forward.1} parent=5 // pred_region
      %s342 = ssub.s32 %s17, 1
      %p343 = scmp.lt.s32.totalorder %s22, 1
      %s344 = scalar_select %p343, %s22, 1
      %s345 = smul.addr %s344, 4
      %s346 = smul.addr %s345, 8
      %s347 = scalar_lea.vmem %s0, %s346
      %p348 = pneg %p43
      %p349 = pneg %p40
      %p350 = pneg %p64
      %p351 = pneg %p61
      %p352 = pneg %p85
      %p353 = pneg %p82
      %p354 = pneg %p106
      %p355 = pneg %p103
      %p356 = pneg %p127
      %p357 = pneg %p124
      %p358 = pneg %p148
      %p359 = pneg %p145
      %p360 = pneg %p169
      %p361 = pneg %p166
      %p362 = pneg %p190
      %p363 = pneg %p187
      %p364 = pneg %p211
      %p365 = pneg %p208
      %p366 = pneg %p232
      %p367 = pneg %p229
      %p368 = pneg %p253
      %p369 = pneg %p250
      %p370 = pneg %p279
      %p371 = pneg %p276
      %p372 = scmp.lt.s32.totalorder %s22, 1
      %s373 = scalar_select %p372, %s22, 1
      %s374 = smul.addr %s373, 4
      %s375 = smul.addr %s374, 8
      %s376 = scalar_lea.vmem %s11, %s375
      %p377 = scmp.lt.s32.totalorder %s22, 1
      %s378 = scalar_select %p377, %s22, 1
      %s379 = smul.addr %s378, 4
      %s380 = smul.addr %s379, 8
      %s381 = scalar_lea.vmem %s0, %s380
      %p382 = scmp.lt.s32.totalorder %s22, 1
      %s383 = scalar_select %p382, %s22, 1
      %s384 = smul.addr %s383, 4
      %s385 = smul.addr %s384, 8
      %s386 = scalar_lea.vmem %s11, %s385
      %v387 = vlaneseq
      %v388 = vand.u32 %v387, 127
      %v389 = vadd.s32 %v388, 128
      %v390 = vld [vmem:[%s10] sm:$0x1f]
      %v391 = vld [vmem:[%s10 + $0x8] sm:$0x1f]
      %v392 = vld [vmem:[%s1] sm:$0xff]
      %v393 = vld [vmem:[%s5] sm:$0xff]
      %v394 = vld [vmem:[%s6] sm:$0xff]
      %v395 = vld [vmem:[%s3] sm:$0xff]
      %v396 = vld [vmem:[%s8] sm:$0xff]
      %v397 = vld [vmem:[%s2] sm:$0xff]
      %v398 = vld [vmem:[%s4] sm:$0xff]
      %v399 = vld [vmem:[%s7] sm:$0xff]
      %v400 = vld [vmem:[%s9] sm:$0xff]
      %v401 = vld [vmem:[%s381] sm:$0xff]
      %v402 = vld [vmem:[%s381 + $0x8] sm:$0xff]
      %v403 = vld [vmem:[%s381 + $0x10] sm:$0xff]
      %v404 = vld [vmem:[%s381 + $0x18] sm:$0xff]
      %406 = vset.pattern.permute.xlu0 0
      %407 = vperm.xlu0 %406, %v397
      %v408 = vpop.permute.xlu0 %407
      %vm410 = vcmask 130048
      %v412 = vsel %vm410, %v392, 0
      %414 = vmatprep.subr.mxu0 0.0
      %415 = vmatpush1.msra.mxu0 0.0
      %416 = vmatprep.subr.mxu0 0.0
      %417 = vmatpush1.msra.mxu0 0.0
      %418 = vmatprep.subr.mxu0 0.0
      %419 = vmatpush1.msra.mxu0 0.0
      %420 = vmatprep.subr.mxu0 0.0
      %421 = vmatpush1.msra.mxu0 0.0
      %422 = vmatprep.subr.mxu0 0.0
      %423 = vmatpush1.msra.mxu0 0.0
      %424 = vmatprep.subr.mxu0 0.0
      %425 = vmatpush1.msra.mxu0 0.0
      %426 = vmatprep.subr.mxu0 0.0
      %427 = vmatpush1.msra.mxu0 0.0
      %428 = vmatprep.subr.mxu0 0.0
      %429 = vmatpush1.msra.mxu0 0.0
      %430 = vmatprep.subr.mxu0 0.0
      %431 = vmatpush1.msra.mxu0 0.0
      %432 = vmatprep.subr.mxu0 0.0
      %433 = vmatpush1.msra.mxu0 0.0
      %434 = vmatprep.subr.mxu0 0.0
      %435 = vmatpush1.msra.mxu0 0.0
      %436 = vmatprep.subr.mxu0 0.0
      %437 = vmatpush1.msra.mxu0 0.0
      %438 = vmatprep.subr.mxu0 0.0
      %439 = vmatpush1.msra.mxu0 0.0
      %440 = vmatprep.subr.mxu0 0.0
      %441 = vmatpush1.msra.mxu0 0.0
      %442 = vmatprep.subr.mxu0 %v404
      %443 = vmatpush1.msra.mxu0 %v403
      %444 = vmatprep.subr.mxu0 %v402
      %445 = vmatpush1.msra.mxu0 %v401
      %446 = vmatprep.subr.mxu0 0.0
      %447 = vmatpush2.msra.mxu0 0.0
      %448 = vmatprep.subr.mxu0 0.0
      %449 = vmatpush2.msra.mxu0 0.0
      %450 = vmatprep.subr.mxu0 0.0
      %451 = vmatpush2.msra.mxu0 0.0
      %452 = vmatprep.subr.mxu0 0.0
      %453 = vmatpush2.msra.mxu0 0.0
      %454 = vmatprep.subr.mxu0 0.0
      %455 = vmatpush2.msra.mxu0 0.0
      %456 = vmatprep.subr.mxu0 0.0
      %457 = vmatpush2.msra.mxu0 0.0
      %458 = vmatprep.subr.mxu0 0.0
      %459 = vmatpush2.msra.mxu0 0.0
      %460 = vmatprep.subr.mxu0 0.0
      %461 = vmatpush2.msra.mxu0 0.0
      %462 = vmatprep.subr.mxu0 0.0
      %463 = vmatpush2.msra.mxu0 0.0
      %464 = vmatprep.subr.mxu0 0.0
      %465 = vmatpush2.msra.mxu0 0.0
      %466 = vmatprep.subr.mxu0 0.0
      %467 = vmatpush2.msra.mxu0 0.0
      %468 = vmatprep.subr.mxu0 0.0
      %469 = vmatpush2.msra.mxu0 0.0
      %470 = vmatprep.subr.mxu0 0.0
      %471 = vmatpush2.msra.mxu0 0.0
      %472 = vmatprep.subr.mxu0 0.0
      %473 = vmatpush2.msra.mxu0 0.0
      %474 = vmatprep.subr.mxu0 0.0
      %475 = vmatpush2.msra.mxu0 0.0
      %476 = vmatprep.subr.mxu0 0.0
      %477 = vmatpush2.msra.mxu0 0.0
      %478 = vmatprep.mubr.f32.mxu0 0.0
      %479 = vmatmul.mubr.f32.gmra.mxu0 %v412
      %v480 = vpop.f32.mrf.mxu0
      %v481 = vadd.f32 %v408, %v480
      %v482 = vpop.f32.mrf.mxu0
      %v483 = vadd.f32 %v408, %v482
      %484 = vdwg.mxu0
      %v485 = vxor.u32 %v481, 2147483648
      %v486 = vxor.u32 %v483, 2147483648
      %v487 = vmul.f32 %v485, 1.442695
      %v488 = vpow.pop %v487
      %v489 = vmul.f32 %v486, 1.442695
      %v490 = vpow.pop %v489
      %v491 = vadd.f32 %v488, 1.0
      %v492 = vadd.f32 %v490, 1.0
      %v493 = vrcp.pop %v491
      %v494 = vmul.f32 1.0, %v493
      %v495 = vrcp.pop %v492
      %v496 = vmul.f32 1.0, %v495
      %v497 = vmul.f32 %v481, %v494
      %v498 = vmul.f32 %v483, %v496
      %499 = vrot.lane.b32.xlu0 %v497, 2
      %v500 = vpop.permute.xlu0 %499
      %501 = vrot.lane.b32.xlu0 %v498, 2
      %v502 = vpop.permute.xlu0 %501
      %vm503 = vcmp.lt.s32.totalorder %v388, 2
      %v504 = vsel %vm503, %v500, %v502
      %v505 = vsel %vm503, %v502, %v500
      %v506 = vlaneseq
      %v507 = vshrl.u32 %v506, 7
      %v508 = vsub.s32 0, %v507
      %v509 = vrot.slane %v390, %v508
      %v510 = vlaneseq
      %v511 = vshrl.u32 %v510, 7
      %v512 = vsub.s32 0, %v511
      %v513 = vrot.slane %v391, %v512
      %v514 = vmul.f32 %v505, %v509
      %v515 = vmul.f32 %v504, %v513
      %516 = vrot.lane.b32.xlu0 %v497, 1
      %v517 = vpop.permute.xlu0 %516
      %518 = vrot.lane.b32.xlu0 %v498, 1
      %v519 = vpop.permute.xlu0 %518
      %vm520 = vcmp.lt.s32.totalorder %v388, 1
      %v521 = vsel %vm520, %v517, %v519
      %v522 = vsel %vm520, %v519, %v517
      %v523 = vlaneseq
      %v524 = vshrl.u32 %v523, 7
      %v525 = vsub.s32 1, %v524
      %v526 = vrot.slane %v390, %v525
      %v527 = vlaneseq
      %v528 = vshrl.u32 %v527, 7
      %v529 = vsub.s32 1, %v528
      %v530 = vrot.slane %v391, %v529
      %v531 = vmul.f32 %v522, %v526
      %v532 = vmul.f32 %v521, %v530
      %533 = vrot.lane.b32.xlu0 %v497, 127
      %v534 = vpop.permute.xlu0 %533
      %535 = vrot.lane.b32.xlu0 %v498, 127
      %v536 = vpop.permute.xlu0 %535
      %vm537 = vcmp.lt.s32.totalorder %v388, 127
      %v538 = vsel %vm537, %v534, %v536
      %v539 = vsel %vm537, %v536, %v534
      %v540 = vlaneseq
      %v541 = vshrl.u32 %v540, 7
      %v542 = vsub.s32 3, %v541
      %v543 = vrot.slane %v390, %v542
      %v544 = vlaneseq
      %v545 = vshrl.u32 %v544, 7
      %v546 = vsub.s32 3, %v545
      %v547 = vrot.slane %v391, %v546
      %v548 = vmul.f32 %v538, %v543
      %v549 = vmul.f32 %v539, %v547
      %550 = vrot.lane.b32.xlu0 %v497, 126
      %v551 = vpop.permute.xlu0 %550
      %552 = vrot.lane.b32.xlu0 %v498, 126
      %v553 = vpop.permute.xlu0 %552
      %vm554 = vcmp.lt.s32.totalorder %v388, 126
      %v555 = vsel %vm554, %v551, %v553
      %v556 = vsel %vm554, %v553, %v551
      %v557 = vlaneseq
      %v558 = vshrl.u32 %v557, 7
      %v559 = vsub.s32 4, %v558
      %v560 = vrot.slane %v390, %v559
      %v561 = vlaneseq
      %v562 = vshrl.u32 %v561, 7
      %v563 = vsub.s32 4, %v562
      %v564 = vrot.slane %v391, %v563
      %v565 = vmul.f32 %v555, %v560
      %v566 = vmul.f32 %v556, %v564
      %568 = vset.pattern.permute.xlu0 0
      %569 = vperm.xlu0 %568, %v395
      %v570 = vpop.permute.xlu0 %569
      %v572 = vmul.f32 %v514, %v570
      %v573 = vmul.f32 %v515, %v570
      %574 = vset.pattern.permute.xlu0 1
      %575 = vperm.xlu0 %574, %v395
      %v576 = vpop.permute.xlu0 %575
      %v578 = vmul.f32 %v531, %v576
      %v579 = vmul.f32 %v532, %v576
      %v580 = vadd.f32 %v572, %v578
      %v581 = vadd.f32 %v573, %v579
      %582 = vset.pattern.permute.xlu0 2
      %583 = vperm.xlu0 %582, %v395
      %v584 = vpop.permute.xlu0 %583
      %v586 = vmul.f32 %v497, %v584
      %v587 = vmul.f32 %v498, %v584
      %v588 = vadd.f32 %v580, %v586
      %v589 = vadd.f32 %v581, %v587
      %590 = vset.pattern.permute.xlu0 3
      %591 = vperm.xlu0 %590, %v395
      %v592 = vpop.permute.xlu0 %591
      %v594 = vmul.f32 %v548, %v592
      %v595 = vmul.f32 %v549, %v592
      %v596 = vadd.f32 %v588, %v594
      %v597 = vadd.f32 %v589, %v595
      %598 = vset.pattern.permute.xlu0 4
      %599 = vperm.xlu0 %598, %v395
      %v600 = vpop.permute.xlu0 %599
      %v602 = vmul.f32 %v565, %v600
      %v603 = vmul.f32 %v566, %v600
      %v604 = vadd.f32 %v596, %v602
      %v605 = vadd.f32 %v597, %v603
      %606 = vrot.lane.b32.xlu0 %v604, 32
      %v607 = vpop.permute.xlu0 %606
      %608 = vrot.lane.b32.xlu0 %v605, 32
      %v609 = vpop.permute.xlu0 %608
      %vm610 = vcmp.lt.s32.totalorder %v388, 32
      %v611 = vsel %vm610, %v607, %v609
      %v612 = vsel %vm610, %v609, %v607
      %vm613 = vcmp.ge.s32.totalorder %v388, 32
      %vm614 = vcmp.ge.s32.totalorder %v389, 32
      %v615 = vsel %vm613, 1, 0
      %v616 = vsel %vm614, 1, 0
      %vm617 = vcmp.eq.s32.totalorder %v615, 1
      %vm618 = vcmp.eq.s32.totalorder %v616, 1
      %v619 = vsel %vm617, %v612, 0.0
      %v620 = vsel %vm618, %v611, 0.0
      %621 = vset.pattern.permute.xlu0 5
      %622 = vperm.xlu0 %621, %v395
      %v623 = vpop.permute.xlu0 %622
      %v625 = vmul.f32 %v514, %v623
      %v626 = vmul.f32 %v515, %v623
      %627 = vset.pattern.permute.xlu0 6
      %628 = vperm.xlu0 %627, %v395
      %v629 = vpop.permute.xlu0 %628
      %v631 = vmul.f32 %v531, %v629
      %v632 = vmul.f32 %v532, %v629
      %v633 = vadd.f32 %v625, %v631
      %v634 = vadd.f32 %v626, %v632
      %635 = vset.pattern.permute.xlu0 7
      %636 = vperm.xlu0 %635, %v395
      %v637 = vpop.permute.xlu0 %636
      %v639 = vmul.f32 %v497, %v637
      %v640 = vmul.f32 %v498, %v637
      %v641 = vadd.f32 %v633, %v639
      %v642 = vadd.f32 %v634, %v640
      %643 = vset.pattern.permute.xlu0 8
      %644 = vperm.xlu0 %643, %v395
      %v645 = vpop.permute.xlu0 %644
      %v647 = vmul.f32 %v548, %v645
      %v648 = vmul.f32 %v549, %v645
      %v649 = vadd.f32 %v641, %v647
      %v650 = vadd.f32 %v642, %v648
      %651 = vset.pattern.permute.xlu0 9
      %652 = vperm.xlu0 %651, %v395
      %v653 = vpop.permute.xlu0 %652
      %v655 = vmul.f32 %v565, %v653
      %v656 = vmul.f32 %v566, %v653
      %v657 = vadd.f32 %v649, %v655
      %v658 = vadd.f32 %v650, %v656
      %659 = vrot.lane.b32.xlu0 %v657, 16
      %v660 = vpop.permute.xlu0 %659
      %661 = vrot.lane.b32.xlu0 %v658, 16
      %v662 = vpop.permute.xlu0 %661
      %vm663 = vcmp.lt.s32.totalorder %v388, 16
      %v664 = vsel %vm663, %v660, %v662
      %v665 = vsel %vm663, %v662, %v660
      %vm666 = vcmp.ge.s32.totalorder %v388, 16
      %vm667 = vcmp.ge.s32.totalorder %v389, 16
      %v668 = vsel %vm666, 1, 0
      %v669 = vsel %vm667, 1, 0
      %vm670 = vcmp.eq.s32.totalorder %v668, 1
      %vm671 = vcmp.eq.s32.totalorder %v669, 1
      %v672 = vsel %vm670, %v665, 0.0
      %v673 = vsel %vm671, %v664, 0.0
      %v674 = vadd.f32 %v619, %v672
      %v675 = vadd.f32 %v620, %v673
      %676 = vset.pattern.permute.xlu0 10
      %677 = vperm.xlu0 %676, %v395
      %v678 = vpop.permute.xlu0 %677
      %v680 = vmul.f32 %v514, %v678
      %v681 = vmul.f32 %v515, %v678
      %682 = vset.pattern.permute.xlu0 11
      %683 = vperm.xlu0 %682, %v395
      %v684 = vpop.permute.xlu0 %683
      %v686 = vmul.f32 %v531, %v684
      %v687 = vmul.f32 %v532, %v684
      %v688 = vadd.f32 %v680, %v686
      %v689 = vadd.f32 %v681, %v687
      %690 = vset.pattern.permute.xlu0 12
      %691 = vperm.xlu0 %690, %v395
      %v692 = vpop.permute.xlu0 %691
      %v694 = vmul.f32 %v497, %v692
      %v695 = vmul.f32 %v498, %v692
      %v696 = vadd.f32 %v688, %v694
      %v697 = vadd.f32 %v689, %v695
      %698 = vset.pattern.permute.xlu0 13
      %699 = vperm.xlu0 %698, %v395
      %v700 = vpop.permute.xlu0 %699
      %v702 = vmul.f32 %v548, %v700
      %v703 = vmul.f32 %v549, %v700
      %v704 = vadd.f32 %v696, %v702
      %v705 = vadd.f32 %v697, %v703
      %706 = vset.pattern.permute.xlu0 14
      %707 = vperm.xlu0 %706, %v395
      %v708 = vpop.permute.xlu0 %707
      %v710 = vmul.f32 %v565, %v708
      %v711 = vmul.f32 %v566, %v708
      %v712 = vadd.f32 %v704, %v710
      %v713 = vadd.f32 %v705, %v711
      %v714 = vadd.f32 %v674, %v712
      %v715 = vadd.f32 %v675, %v713
      %716 = vset.pattern.permute.xlu0 15
      %717 = vperm.xlu0 %716, %v395
      %v718 = vpop.permute.xlu0 %717
      %v720 = vmul.f32 %v514, %v718
      %v721 = vmul.f32 %v515, %v718
      %722 = vset.pattern.permute.xlu0 16
      %723 = vperm.xlu0 %722, %v395
      %v724 = vpop.permute.xlu0 %723
      %v726 = vmul.f32 %v531, %v724
      %v727 = vmul.f32 %v532, %v724
      %v728 = vadd.f32 %v720, %v726
      %v729 = vadd.f32 %v721, %v727
      %730 = vset.pattern.permute.xlu0 17
      %731 = vperm.xlu0 %730, %v395
      %v732 = vpop.permute.xlu0 %731
      %v734 = vmul.f32 %v497, %v732
      %v735 = vmul.f32 %v498, %v732
      %v736 = vadd.f32 %v728, %v734
      %v737 = vadd.f32 %v729, %v735
      %738 = vset.pattern.permute.xlu0 18
      %739 = vperm.xlu0 %738, %v395
      %v740 = vpop.permute.xlu0 %739
      %v742 = vmul.f32 %v548, %v740
      %v743 = vmul.f32 %v549, %v740
      %v744 = vadd.f32 %v736, %v742
      %v745 = vadd.f32 %v737, %v743
      %746 = vset.pattern.permute.xlu0 19
      %747 = vperm.xlu0 %746, %v395
      %v748 = vpop.permute.xlu0 %747
      %v750 = vmul.f32 %v565, %v748
      %v751 = vmul.f32 %v566, %v748
      %v752 = vadd.f32 %v744, %v750
      %v753 = vadd.f32 %v745, %v751
      %754 = vrot.lane.b32.xlu0 %v752, 112
      %v755 = vpop.permute.xlu0 %754
      %756 = vrot.lane.b32.xlu0 %v753, 112
      %v757 = vpop.permute.xlu0 %756
      %vm758 = vcmp.lt.s32.totalorder %v388, 112
      %v759 = vsel %vm758, %v755, %v757
      %v760 = vsel %vm758, %v757, %v755
      %vm761 = vcmp.lt.s32.totalorder %v388, 240
      %vm762 = vcmp.lt.s32.totalorder %v389, 240
      %v763 = vsel %vm761, 1, 0
      %v764 = vsel %vm762, 1, 0
      %vm765 = vcmp.eq.s32.totalorder %v763, 1
      %vm766 = vcmp.eq.s32.totalorder %v764, 1
      %v767 = vsel %vm765, %v759, 0.0
      %v768 = vsel %vm766, %v760, 0.0
      %v769 = vadd.f32 %v714, %v767
      %v770 = vadd.f32 %v715, %v768
      %771 = vset.pattern.permute.xlu0 20
      %772 = vperm.xlu0 %771, %v395
      %v773 = vpop.permute.xlu0 %772
      %v775 = vmul.f32 %v514, %v773
      %v776 = vmul.f32 %v515, %v773
      %777 = vset.pattern.permute.xlu0 21
      %778 = vperm.xlu0 %777, %v395
      %v779 = vpop.permute.xlu0 %778
      %v781 = vmul.f32 %v531, %v779
      %v782 = vmul.f32 %v532, %v779
      %v783 = vadd.f32 %v775, %v781
      %v784 = vadd.f32 %v776, %v782
      %785 = vset.pattern.permute.xlu0 22
      %786 = vperm.xlu0 %785, %v395
      %v787 = vpop.permute.xlu0 %786
      %v789 = vmul.f32 %v497, %v787
      %v790 = vmul.f32 %v498, %v787
      %v791 = vadd.f32 %v783, %v789
      %v792 = vadd.f32 %v784, %v790
      %793 = vset.pattern.permute.xlu0 23
      %794 = vperm.xlu0 %793, %v395
      %v795 = vpop.permute.xlu0 %794
      %v797 = vmul.f32 %v548, %v795
      %v798 = vmul.f32 %v549, %v795
      %v799 = vadd.f32 %v791, %v797
      %v800 = vadd.f32 %v792, %v798
      %801 = vset.pattern.permute.xlu0 24
      %802 = vperm.xlu0 %801, %v395
      %v803 = vpop.permute.xlu0 %802
      %v805 = vmul.f32 %v565, %v803
      %v806 = vmul.f32 %v566, %v803
      %v807 = vadd.f32 %v799, %v805
      %v808 = vadd.f32 %v800, %v806
      %809 = vrot.lane.b32.xlu0 %v807, 96
      %v810 = vpop.permute.xlu0 %809
      %811 = vrot.lane.b32.xlu0 %v808, 96
      %v812 = vpop.permute.xlu0 %811
      %vm813 = vcmp.lt.s32.totalorder %v388, 96
      %v814 = vsel %vm813, %v810, %v812
      %v815 = vsel %vm813, %v812, %v810
      %vm816 = vcmp.lt.s32.totalorder %v388, 224
      %vm817 = vcmp.lt.s32.totalorder %v389, 224
      %v818 = vsel %vm816, 1, 0
      %v819 = vsel %vm817, 1, 0
      %vm820 = vcmp.eq.s32.totalorder %v818, 1
      %vm821 = vcmp.eq.s32.totalorder %v819, 1
      %v822 = vsel %vm820, %v814, 0.0
      %v823 = vsel %vm821, %v815, 0.0
      %v824 = vadd.f32 %v769, %v822
      %v825 = vadd.f32 %v770, %v823
      %827 = vset.pattern.permute.xlu0 0
      %828 = vperm.xlu0 %827, %v398
      %v829 = vpop.permute.xlu0 %828
      %v831 = vadd.f32 %v824, %v829
      %v832 = vadd.f32 %v825, %v829
      %v833 = vxor.u32 %v831, 2147483648
      %v834 = vxor.u32 %v832, 2147483648
      %v835 = vmul.f32 %v833, 1.442695
      %v836 = vpow.pop %v835
      %v837 = vmul.f32 %v834, 1.442695
      %v838 = vpow.pop %v837
      %v839 = vadd.f32 %v836, 1.0
      %v840 = vadd.f32 %v838, 1.0
      %v841 = vrcp.pop %v839
      %v842 = vmul.f32 1.0, %v841
      %v843 = vrcp.pop %v840
      %v844 = vmul.f32 1.0, %v843
      %v845 = vmul.f32 %v831, %v842
      %v846 = vmul.f32 %v832, %v844
      %vm847 = vcmask 64512
      %v849 = vsel %vm847, %v394, 0
      %851 = vmatprep.subr.mxu0 0.0
      %852 = vmatpush1.msra.mxu0 0.0
      %853 = vmatprep.subr.mxu0 0.0
      %854 = vmatpush1.msra.mxu0 0.0
      %855 = vmatprep.subr.mxu0 0.0
      %856 = vmatpush1.msra.mxu0 0.0
      %857 = vmatprep.subr.mxu0 0.0
      %858 = vmatpush1.msra.mxu0 0.0
      %859 = vmatprep.subr.mxu0 0.0
      %860 = vmatpush1.msra.mxu0 0.0
      %861 = vmatprep.subr.mxu0 0.0
      %862 = vmatpush1.msra.mxu0 0.0
      %863 = vmatprep.subr.mxu0 0.0
      %864 = vmatpush1.msra.mxu0 0.0
      %865 = vmatprep.subr.mxu0 0.0
      %866 = vmatpush1.msra.mxu0 0.0
      %867 = vmatprep.subr.mxu0 0.0
      %868 = vmatpush1.msra.mxu0 0.0
      %869 = vmatprep.subr.mxu0 0.0
      %870 = vmatpush1.msra.mxu0 0.0
      %871 = vmatprep.subr.mxu0 0.0
      %872 = vmatpush1.msra.mxu0 0.0
      %873 = vmatprep.subr.mxu0 0.0
      %874 = vmatpush1.msra.mxu0 0.0
      %875 = vmatprep.subr.mxu0 0.0
      %876 = vmatpush1.msra.mxu0 0.0
      %877 = vmatprep.subr.mxu0 0.0
      %878 = vmatpush1.msra.mxu0 0.0
      %879 = vmatprep.subr.mxu0 0.0
      %880 = vmatpush1.msra.mxu0 0.0
      %881 = vmatprep.subr.mxu0 %v846
      %882 = vmatpush1.msra.mxu0 %v845
      %883 = vmatprep.subr.mxu0 0.0
      %884 = vmatpush2.msra.mxu0 0.0
      %885 = vmatprep.subr.mxu0 0.0
      %886 = vmatpush2.msra.mxu0 0.0
      %887 = vmatprep.subr.mxu0 0.0
      %888 = vmatpush2.msra.mxu0 0.0
      %889 = vmatprep.subr.mxu0 0.0
      %890 = vmatpush2.msra.mxu0 0.0
      %891 = vmatprep.subr.mxu0 0.0
      %892 = vmatpush2.msra.mxu0 0.0
      %893 = vmatprep.subr.mxu0 0.0
      %894 = vmatpush2.msra.mxu0 0.0
      %895 = vmatprep.subr.mxu0 0.0
      %896 = vmatpush2.msra.mxu0 0.0
      %897 = vmatprep.subr.mxu0 0.0
      %898 = vmatpush2.msra.mxu0 0.0
      %899 = vmatprep.subr.mxu0 0.0
      %900 = vmatpush2.msra.mxu0 0.0
      %901 = vmatprep.subr.mxu0 0.0
      %902 = vmatpush2.msra.mxu0 0.0
      %903 = vmatprep.subr.mxu0 0.0
      %904 = vmatpush2.msra.mxu0 0.0
      %905 = vmatprep.subr.mxu0 0.0
      %906 = vmatpush2.msra.mxu0 0.0
      %907 = vmatprep.subr.mxu0 0.0
      %908 = vmatpush2.msra.mxu0 0.0
      %909 = vmatprep.subr.mxu0 0.0
      %910 = vmatpush2.msra.mxu0 0.0
      %911 = vmatprep.subr.mxu0 0.0
      %912 = vmatpush2.msra.mxu0 0.0
      %913 = vmatprep.subr.mxu0 0.0
      %914 = vmatpush2.msra.mxu0 0.0
      %915 = vmatprep.mubr.f32.mxu0 0.0
      %916 = vmatmul.mubr.f32.gmra.mxu0 %v849
      %v917 = vpop.f32.mrf.mxu0
      %v918 = vadd.f32 0.0, %v917
      %v919 = vpop.f32.mrf.mxu0
      %v920 = vadd.f32 0.0, %v919
      %921 = vdwg.mxu0
      %v923 = vsel %vm847, %v393, 0
      %925 = vmatprep.subr.mxu0 0.0
      %926 = vmatpush1.msra.mxu0 0.0
      %927 = vmatprep.subr.mxu0 0.0
      %928 = vmatpush1.msra.mxu0 0.0
      %929 = vmatprep.subr.mxu0 0.0
      %930 = vmatpush1.msra.mxu0 0.0
      %931 = vmatprep.subr.mxu0 0.0
      %932 = vmatpush1.msra.mxu0 0.0
      %933 = vmatprep.subr.mxu0 0.0
      %934 = vmatpush1.msra.mxu0 0.0
      %935 = vmatprep.subr.mxu0 0.0
      %936 = vmatpush1.msra.mxu0 0.0
      %937 = vmatprep.subr.mxu0 0.0
      %938 = vmatpush1.msra.mxu0 0.0
      %939 = vmatprep.subr.mxu0 0.0
      %940 = vmatpush1.msra.mxu0 0.0
      %941 = vmatprep.subr.mxu0 0.0
      %942 = vmatpush1.msra.mxu0 0.0
      %943 = vmatprep.subr.mxu0 0.0
      %944 = vmatpush1.msra.mxu0 0.0
      %945 = vmatprep.subr.mxu0 0.0
      %946 = vmatpush1.msra.mxu0 0.0
      %947 = vmatprep.subr.mxu0 0.0
      %948 = vmatpush1.msra.mxu0 0.0
      %949 = vmatprep.subr.mxu0 0.0
      %950 = vmatpush1.msra.mxu0 0.0
      %951 = vmatprep.subr.mxu0 0.0
      %952 = vmatpush1.msra.mxu0 0.0
      %953 = vmatprep.subr.mxu0 0.0
      %954 = vmatpush1.msra.mxu0 0.0
      %955 = vmatprep.subr.mxu0 %v498
      %956 = vmatpush1.msra.mxu0 %v497
      %957 = vmatprep.subr.mxu0 0.0
      %958 = vmatpush2.msra.mxu0 0.0
      %959 = vmatprep.subr.mxu0 0.0
      %960 = vmatpush2.msra.mxu0 0.0
      %961 = vmatprep.subr.mxu0 0.0
      %962 = vmatpush2.msra.mxu0 0.0
      %963 = vmatprep.subr.mxu0 0.0
      %964 = vmatpush2.msra.mxu0 0.0
      %965 = vmatprep.subr.mxu0 0.0
      %966 = vmatpush2.msra.mxu0 0.0
      %967 = vmatprep.subr.mxu0 0.0
      %968 = vmatpush2.msra.mxu0 0.0
      %969 = vmatprep.subr.mxu0 0.0
      %970 = vmatpush2.msra.mxu0 0.0
      %971 = vmatprep.subr.mxu0 0.0
      %972 = vmatpush2.msra.mxu0 0.0
      %973 = vmatprep.subr.mxu0 0.0
      %974 = vmatpush2.msra.mxu0 0.0
      %975 = vmatprep.subr.mxu0 0.0
      %976 = vmatpush2.msra.mxu0 0.0
      %977 = vmatprep.subr.mxu0 0.0
      %978 = vmatpush2.msra.mxu0 0.0
      %979 = vmatprep.subr.mxu0 0.0
      %980 = vmatpush2.msra.mxu0 0.0
      %981 = vmatprep.subr.mxu0 0.0
      %982 = vmatpush2.msra.mxu0 0.0
      %983 = vmatprep.subr.mxu0 0.0
      %984 = vmatpush2.msra.mxu0 0.0
      %985 = vmatprep.subr.mxu0 0.0
      %986 = vmatpush2.msra.mxu0 0.0
      %987 = vmatprep.subr.mxu0 0.0
      %988 = vmatpush2.msra.mxu0 0.0
      %989 = vmatprep.mubr.f32.mxu0 0.0
      %990 = vmatmul.mubr.f32.gmra.mxu0 %v923
      %v991 = vpop.f32.mrf.mxu0
      %v992 = vadd.f32 %v918, %v991
      %v993 = vpop.f32.mrf.mxu0
      %v994 = vadd.f32 %v920, %v993
      %995 = vdwg.mxu0
      %997 = vset.pattern.permute.xlu0 0
      %998 = vperm.xlu0 %997, %v399
      %v999 = vpop.permute.xlu0 %998
      %v1001 = vadd.f32 %v992, %v999
      %v1002 = vadd.f32 %v994, %v999
      %1003 = vrot.lane.b32.xlu0 %v1001, 2
      %v1004 = vpop.permute.xlu0 %1003
      %1005 = vrot.lane.b32.xlu0 %v1002, 2
      %v1006 = vpop.permute.xlu0 %1005
      %v1007 = vsel %vm503, %v1004, %v1006
      %v1008 = vsel %vm503, %v1006, %v1004
      %v1009 = vmul.f32 %v1008, %v509
      %v1010 = vmul.f32 %v1007, %v513
      %1011 = vrot.lane.b32.xlu0 %v1001, 1
      %v1012 = vpop.permute.xlu0 %1011
      %1013 = vrot.lane.b32.xlu0 %v1002, 1
      %v1014 = vpop.permute.xlu0 %1013
      %v1015 = vsel %vm520, %v1012, %v1014
      %v1016 = vsel %vm520, %v1014, %v1012
      %v1017 = vmul.f32 %v1016, %v526
      %v1018 = vmul.f32 %v1015, %v530
      %1019 = vrot.lane.b32.xlu0 %v1001, 127
      %v1020 = vpop.permute.xlu0 %1019
      %1021 = vrot.lane.b32.xlu0 %v1002, 127
      %v1022 = vpop.permute.xlu0 %1021
      %v1023 = vsel %vm537, %v1020, %v1022
      %v1024 = vsel %vm537, %v1022, %v1020
      %v1025 = vmul.f32 %v1023, %v543
      %v1026 = vmul.f32 %v1024, %v547
      %1027 = vrot.lane.b32.xlu0 %v1001, 126
      %v1028 = vpop.permute.xlu0 %1027
      %1029 = vrot.lane.b32.xlu0 %v1002, 126
      %v1030 = vpop.permute.xlu0 %1029
      %v1031 = vsel %vm554, %v1028, %v1030
      %v1032 = vsel %vm554, %v1030, %v1028
      %v1033 = vmul.f32 %v1031, %v560
      %v1034 = vmul.f32 %v1032, %v564
      %1036 = vset.pattern.permute.xlu0 0
      %1037 = vperm.xlu0 %1036, %v396
      %v1038 = vpop.permute.xlu0 %1037
      %v1040 = vmul.f32 %v1009, %v1038
      %v1041 = vmul.f32 %v1010, %v1038
      %1042 = vset.pattern.permute.xlu0 1
      %1043 = vperm.xlu0 %1042, %v396
      %v1044 = vpop.permute.xlu0 %1043
      %v1046 = vmul.f32 %v1017, %v1044
      %v1047 = vmul.f32 %v1018, %v1044
      %v1048 = vadd.f32 %v1040, %v1046
      %v1049 = vadd.f32 %v1041, %v1047
      %1050 = vset.pattern.permute.xlu0 2
      %1051 = vperm.xlu0 %1050, %v396
      %v1052 = vpop.permute.xlu0 %1051
      %v1054 = vmul.f32 %v1001, %v1052
      %v1055 = vmul.f32 %v1002, %v1052
      %v1056 = vadd.f32 %v1048, %v1054
      %v1057 = vadd.f32 %v1049, %v1055
      %1058 = vset.pattern.permute.xlu0 3
      %1059 = vperm.xlu0 %1058, %v396
      %v1060 = vpop.permute.xlu0 %1059
      %v1062 = vmul.f32 %v1025, %v1060
      %v1063 = vmul.f32 %v1026, %v1060
      %v1064 = vadd.f32 %v1056, %v1062
      %v1065 = vadd.f32 %v1057, %v1063
      %1066 = vset.pattern.permute.xlu0 4
      %1067 = vperm.xlu0 %1066, %v396
      %v1068 = vpop.permute.xlu0 %1067
      %v1070 = vmul.f32 %v1033, %v1068
      %v1071 = vmul.f32 %v1034, %v1068
      %v1072 = vadd.f32 %v1064, %v1070
      %v1073 = vadd.f32 %v1065, %v1071
      %1074 = vrot.lane.b32.xlu0 %v1072, 32
      %v1075 = vpop.permute.xlu0 %1074
      %1076 = vrot.lane.b32.xlu0 %v1073, 32
      %v1077 = vpop.permute.xlu0 %1076
      %v1078 = vsel %vm610, %v1075, %v1077
      %v1079 = vsel %vm610, %v1077, %v1075
      %v1080 = vsel %vm617, %v1079, 0.0
      %v1081 = vsel %vm618, %v1078, 0.0
      %1082 = vset.pattern.permute.xlu0 5
      %1083 = vperm.xlu0 %1082, %v396
      %v1084 = vpop.permute.xlu0 %1083
      %v1086 = vmul.f32 %v1009, %v1084
      %v1087 = vmul.f32 %v1010, %v1084
      %1088 = vset.pattern.permute.xlu0 6
      %1089 = vperm.xlu0 %1088, %v396
      %v1090 = vpop.permute.xlu0 %1089
      %v1092 = vmul.f32 %v1017, %v1090
      %v1093 = vmul.f32 %v1018, %v1090
      %v1094 = vadd.f32 %v1086, %v1092
      %v1095 = vadd.f32 %v1087, %v1093
      %1096 = vset.pattern.permute.xlu0 7
      %1097 = vperm.xlu0 %1096, %v396
      %v1098 = vpop.permute.xlu0 %1097
      %v1100 = vmul.f32 %v1001, %v1098
      %v1101 = vmul.f32 %v1002, %v1098
      %v1102 = vadd.f32 %v1094, %v1100
      %v1103 = vadd.f32 %v1095, %v1101
      %1104 = vset.pattern.permute.xlu0 8
      %1105 = vperm.xlu0 %1104, %v396
      %v1106 = vpop.permute.xlu0 %1105
      %v1108 = vmul.f32 %v1025, %v1106
      %v1109 = vmul.f32 %v1026, %v1106
      %v1110 = vadd.f32 %v1102, %v1108
      %v1111 = vadd.f32 %v1103, %v1109
      %1112 = vset.pattern.permute.xlu0 9
      %1113 = vperm.xlu0 %1112, %v396
      %v1114 = vpop.permute.xlu0 %1113
      %v1116 = vmul.f32 %v1033, %v1114
      %v1117 = vmul.f32 %v1034, %v1114
      %v1118 = vadd.f32 %v1110, %v1116
      %v1119 = vadd.f32 %v1111, %v1117
      %1120 = vrot.lane.b32.xlu0 %v1118, 16
      %v1121 = vpop.permute.xlu0 %1120
      %1122 = vrot.lane.b32.xlu0 %v1119, 16
      %v1123 = vpop.permute.xlu0 %1122
      %v1124 = vsel %vm663, %v1121, %v1123
      %v1125 = vsel %vm663, %v1123, %v1121
      %v1126 = vsel %vm670, %v1125, 0.0
      %v1127 = vsel %vm671, %v1124, 0.0
      %v1128 = vadd.f32 %v1080, %v1126
      %v1129 = vadd.f32 %v1081, %v1127
      %1130 = vset.pattern.permute.xlu0 10
      %1131 = vperm.xlu0 %1130, %v396
      %v1132 = vpop.permute.xlu0 %1131
      %v1134 = vmul.f32 %v1009, %v1132
      %v1135 = vmul.f32 %v1010, %v1132
      %1136 = vset.pattern.permute.xlu0 11
      %1137 = vperm.xlu0 %1136, %v396
      %v1138 = vpop.permute.xlu0 %1137
      %v1140 = vmul.f32 %v1017, %v1138
      %v1141 = vmul.f32 %v1018, %v1138
      %v1142 = vadd.f32 %v1134, %v1140
      %v1143 = vadd.f32 %v1135, %v1141
      %1144 = vset.pattern.permute.xlu0 12
      %1145 = vperm.xlu0 %1144, %v396
      %v1146 = vpop.permute.xlu0 %1145
      %v1148 = vmul.f32 %v1001, %v1146
      %v1149 = vmul.f32 %v1002, %v1146
      %v1150 = vadd.f32 %v1142, %v1148
      %v1151 = vadd.f32 %v1143, %v1149
      %1152 = vset.pattern.permute.xlu0 13
      %1153 = vperm.xlu0 %1152, %v396
      %v1154 = vpop.permute.xlu0 %1153
      %v1156 = vmul.f32 %v1025, %v1154
      %v1157 = vmul.f32 %v1026, %v1154
      %v1158 = vadd.f32 %v1150, %v1156
      %v1159 = vadd.f32 %v1151, %v1157
      %1160 = vset.pattern.permute.xlu0 14
      %1161 = vperm.xlu0 %1160, %v396
      %v1162 = vpop.permute.xlu0 %1161
      %v1164 = vmul.f32 %v1033, %v1162
      %v1165 = vmul.f32 %v1034, %v1162
      %v1166 = vadd.f32 %v1158, %v1164
      %v1167 = vadd.f32 %v1159, %v1165
      %v1168 = vadd.f32 %v1128, %v1166
      %v1169 = vadd.f32 %v1129, %v1167
      %1170 = vset.pattern.permute.xlu0 15
      %1171 = vperm.xlu0 %1170, %v396
      %v1172 = vpop.permute.xlu0 %1171
      %v1174 = vmul.f32 %v1009, %v1172
      %v1175 = vmul.f32 %v1010, %v1172
      %1176 = vset.pattern.permute.xlu0 16
      %1177 = vperm.xlu0 %1176, %v396
      %v1178 = vpop.permute.xlu0 %1177
      %v1180 = vmul.f32 %v1017, %v1178
      %v1181 = vmul.f32 %v1018, %v1178
      %v1182 = vadd.f32 %v1174, %v1180
      %v1183 = vadd.f32 %v1175, %v1181
      %1184 = vset.pattern.permute.xlu0 17
      %1185 = vperm.xlu0 %1184, %v396
      %v1186 = vpop.permute.xlu0 %1185
      %v1188 = vmul.f32 %v1001, %v1186
      %v1189 = vmul.f32 %v1002, %v1186
      %v1190 = vadd.f32 %v1182, %v1188
      %v1191 = vadd.f32 %v1183, %v1189
      %1192 = vset.pattern.permute.xlu0 18
      %1193 = vperm.xlu0 %1192, %v396
      %v1194 = vpop.permute.xlu0 %1193
      %v1196 = vmul.f32 %v1025, %v1194
      %v1197 = vmul.f32 %v1026, %v1194
      %v1198 = vadd.f32 %v1190, %v1196
      %v1199 = vadd.f32 %v1191, %v1197
      %1200 = vset.pattern.permute.xlu0 19
      %1201 = vperm.xlu0 %1200, %v396
      %v1202 = vpop.permute.xlu0 %1201
      %v1204 = vmul.f32 %v1033, %v1202
      %v1205 = vmul.f32 %v1034, %v1202
      %v1206 = vadd.f32 %v1198, %v1204
      %v1207 = vadd.f32 %v1199, %v1205
      %1208 = vrot.lane.b32.xlu0 %v1206, 112
      %v1209 = vpop.permute.xlu0 %1208
      %1210 = vrot.lane.b32.xlu0 %v1207, 112
      %v1211 = vpop.permute.xlu0 %1210
      %v1212 = vsel %vm758, %v1209, %v1211
      %v1213 = vsel %vm758, %v1211, %v1209
      %v1214 = vsel %vm765, %v1212, 0.0
      %v1215 = vsel %vm766, %v1213, 0.0
      %v1216 = vadd.f32 %v1168, %v1214
      %v1217 = vadd.f32 %v1169, %v1215
      %1218 = vset.pattern.permute.xlu0 20
      %1219 = vperm.xlu0 %1218, %v396
      %v1220 = vpop.permute.xlu0 %1219
      %v1222 = vmul.f32 %v1009, %v1220
      %v1223 = vmul.f32 %v1010, %v1220
      %1224 = vset.pattern.permute.xlu0 21
      %1225 = vperm.xlu0 %1224, %v396
      %v1226 = vpop.permute.xlu0 %1225
      %v1228 = vmul.f32 %v1017, %v1226
      %v1229 = vmul.f32 %v1018, %v1226
      %v1230 = vadd.f32 %v1222, %v1228
      %v1231 = vadd.f32 %v1223, %v1229
      %1232 = vset.pattern.permute.xlu0 22
      %1233 = vperm.xlu0 %1232, %v396
      %v1234 = vpop.permute.xlu0 %1233
      %v1236 = vmul.f32 %v1001, %v1234
      %v1237 = vmul.f32 %v1002, %v1234
      %v1238 = vadd.f32 %v1230, %v1236
      %v1239 = vadd.f32 %v1231, %v1237
      %1240 = vset.pattern.permute.xlu0 23
      %1241 = vperm.xlu0 %1240, %v396
      %v1242 = vpop.permute.xlu0 %1241
      %v1244 = vmul.f32 %v1025, %v1242
      %v1245 = vmul.f32 %v1026, %v1242
      %v1246 = vadd.f32 %v1238, %v1244
      %v1247 = vadd.f32 %v1239, %v1245
      %1248 = vset.pattern.permute.xlu0 24
      %1249 = vperm.xlu0 %1248, %v396
      %v1250 = vpop.permute.xlu0 %1249
      %v1252 = vmul.f32 %v1033, %v1250
      %v1253 = vmul.f32 %v1034, %v1250
      %v1254 = vadd.f32 %v1246, %v1252
      %v1255 = vadd.f32 %v1247, %v1253
      %1256 = vrot.lane.b32.xlu0 %v1254, 96
      %v1257 = vpop.permute.xlu0 %1256
      %1258 = vrot.lane.b32.xlu0 %v1255, 96
      %v1259 = vpop.permute.xlu0 %1258
      %v1260 = vsel %vm813, %v1257, %v1259
      %v1261 = vsel %vm813, %v1259, %v1257
      %v1262 = vsel %vm820, %v1260, 0.0
      %v1263 = vsel %vm821, %v1261, 0.0
      %v1264 = vadd.f32 %v1216, %v1262
      %v1265 = vadd.f32 %v1217, %v1263
      %1267 = vset.pattern.permute.xlu0 0
      %1268 = vperm.xlu0 %1267, %v400
      %v1269 = vpop.permute.xlu0 %1268
      %v1271 = vadd.f32 %v1264, %v1269
      %v1272 = vadd.f32 %v1265, %v1269
      %v1273 = vadd.f32 %v1001, %v401
      %v1274 = vadd.f32 %v1002, %v402
      %1275 = vst [vmem:[%s386] sm:$0xff] %v1273
      %1276 = vst [vmem:[%s386 + $0x8] sm:$0xff] %v1274
      %v1277 = vadd.f32 %v1271, %v403
      %v1278 = vadd.f32 %v1272, %v404
      %1279 = vst [vmem:[%s386 + $0x10] sm:$0xff] %v1277
      %1280 = vst [vmem:[%s386 + $0x18] sm:$0xff] %v1278
      %p1281 = scmp.lt.s32.totalorder %s22, 1
      %s1282 = scalar_select %p1281, %s22, 1
      %s1283 = smul.addr %s1282, 4
      %s1284 = smul.addr %s1283, 8
      %s1285 = scalar_lea.vmem %s11, %s1284
      // Predicated region
      $region65: #{ghost_bottleneck_forward.1} parent=63 // pred_check
        %p1286 = pneg %p276
      $region66: #{ghost_bottleneck_forward.1} parent=63 // pred_check_branch
        %1288 = sbr.rel (%p1286) target = $region68
      $region67: #{ghost_bottleneck_forward.1} parent=63 // pred_region
        _
      $region68: #{ghost_bottleneck_forward.1} parent=63 // pred_fallthru
        _
    $region64: #{ghost_bottleneck_forward.1} parent=5 // pred_fallthru
      _
    %p1289 = scmp.le.s32.totalorder 2, %s17
    // Predicated region
    $region69: #{ghost_bottleneck_forward.1} parent=5 // pred_check
      %p1290 = pneg %p1289
    $region70: #{ghost_bottleneck_forward.1} parent=5 // pred_check_branch
      %1292 = sbr.rel (%p1290) target = $region72
    $region71: #{ghost_bottleneck_forward.1} parent=5 // pred_region
      %s1293 = ssub.s32 %s17, 2
      // Predicated region
      $region73: #{ghost_bottleneck_forward.1} parent=71 // pred_check
        %p1294 = pneg %p282
      $region74: #{ghost_bottleneck_forward.1} parent=71 // pred_check_branch
        %1296 = sbr.rel (%p1294) target = $region76
      $region75: #{ghost_bottleneck_forward.1} parent=71 // pred_region
        %p1297 = scmp.lt.s32.totalorder %s23, 1
        %s1298 = scalar_select %p1297, %s23, 1
        %s1299 = smul.addr %s1298, 4
        %s1300 = smul.addr %s1299, 8
        %s1301 = scalar_lea.vmem %s11, %s1300
      $region76: #{ghost_bottleneck_forward.1} parent=71 // pred_fallthru
        _
    $region72: #{ghost_bottleneck_forward.1} parent=5 // pred_fallthru
      _
  $region6: #{ghost_bottleneck_forward.1} parent=0 // loop_footer
    %s21 = sadd.s32 1, %s17
  $region7: #{ghost_bottleneck_forward.1} parent=0 // loop_footer_branch
    %16 = sbr.rel target = $region3
  $region8: #{ghost_bottleneck_forward.1} parent=0 // loop_exit
    _

</llo_original>
